<compile_context>
chip_gen: v7x
topology: tpu7x:2x2x1
jax: 0.10.0
libtpu: 0.0.40
codegen_flags: <defaults>
</compile_context>

<pallas_src>
import functools

import jax
import jax.numpy as jnp
from jax import lax
from jax.experimental import pallas as pl
from jax.experimental.pallas import tpu as pltpu


# ---------------------------------------------------------------------------
# Fused kernel: 2-layer LSTM recurrence + masked scaled-dot-product attention.
# Single invocation (no grid); everything stays resident in VMEM.
# ---------------------------------------------------------------------------
def _semantic_kernel(gx1_ref, whh1_ref, w2_ref, b2_ref, enc_ref, enct_ref,
                     pad_ref, o_ref, sem_ref, *, inv_temp):
    Tq, B, G = gx1_ref.shape            # gx1: (Tq, B, 4D) f32 (hoisted x@W_ih1 + b1)
    D = G // 4
    Tk = enc_ref.shape[1]               # enc: (B, Tk, D) bf16  (V);  enct: (B, D, Tk) bf16 (K^T)

    # Loop-invariant weights: load once (bf16 operands for the MXU, f32 accum).
    whh1 = whh1_ref[...]                            # (D, 4D)  bf16, gate-packed i|f|g|o
    w2 = w2_ref[...]                                # (2D, 4D) bf16, rows = [W_ih2 ; W_hh2]
    b2 = jnp.broadcast_to(b2_ref[...], (B, G))      # bias broadcast hoisted out of the loop

    h1 = jnp.zeros((B, D), jnp.float32)
    c1 = jnp.zeros((B, D), jnp.float32)
    h2 = jnp.zeros((B, D), jnp.float32)
    c2 = jnp.zeros((B, D), jnp.float32)

    # ---- fully-unrolled serial recurrence (Tq small & static) ----
    for t in range(Tq):
        # layer 1: one fused-gate matmul, packed nonlinearities, lane-sliced gates
        p1 = gx1_ref[t] + jnp.dot(h1.astype(jnp.bfloat16), whh1,
                                  preferred_element_type=jnp.float32)   # (B, 4D)
        sg1 = jax.nn.sigmoid(p1)
        th1 = jnp.tanh(p1)
        c1 = sg1[:, D:2 * D] * c1 + sg1[:, 0:D] * th1[:, 2 * D:3 * D]   # f*c + i*g
        h1 = sg1[:, 3 * D:4 * D] * jnp.tanh(c1)                          # o*tanh(c)

        # layer 2: single (B, 2D) @ (2D, 4D) fused-gate matmul
        h12 = jnp.concatenate([h1, h2], axis=-1).astype(jnp.bfloat16)    # (B, 2D)
        p2 = b2 + jnp.dot(h12, w2, preferred_element_type=jnp.float32)   # (B, 4D)
        sg2 = jax.nn.sigmoid(p2)
        th2 = jnp.tanh(p2)
        c2 = sg2[:, D:2 * D] * c2 + sg2[:, 0:D] * th2[:, 2 * D:3 * D]
        h2 = sg2[:, 3 * D:4 * D] * jnp.tanh(c2)

        # batch-major bf16 scratch, static-slice write
        sem_ref[:, t:t + 1, :] = h2.astype(jnp.bfloat16)[:, None, :]

    # ---- masked scaled-dot-product attention: Q = LSTM out, K = V = enc ----
    sem = sem_ref[...]                                       # (B, Tq, D) bf16
    s = jnp.einsum("btd,bdk->btk", sem, enct_ref[...],
                   preferred_element_type=jnp.float32) * inv_temp
    row = lax.broadcasted_iota(jnp.int32, (Tq, Tk), 0)
    col = lax.broadcasted_iota(jnp.int32, (Tq, Tk), 1)
    mask = (pad_ref[...] != 0) & (col <= row)[None]          # (B,Tq,1) & (1,Tq,Tk)
    s = jnp.where(mask, s, -1e9)                             # == masked_fill(-1e9)
    s = s - jnp.max(s, axis=-1, keepdims=True)
    p = jnp.exp(s)
    p = p * pl.reciprocal(jnp.sum(p, axis=-1, keepdims=True), approx=True)
    o_ref[...] = jnp.einsum("btk,bkd->btd", p.astype(jnp.bfloat16), enc_ref[...],
                            preferred_element_type=jnp.float32)


def _padded_bytes(shape, dtype):
    """Rough VMEM footprint: pad last dim to 128 lanes, second-to-last to 8 sublanes."""
    dims = list(shape) if len(shape) else [1]
    dims[-1] = -(-dims[-1] // 128) * 128
    if len(dims) >= 2:
        dims[-2] = -(-dims[-2] // 8) * 8
    n = 1
    for d in dims:
        n *= d
    return n * jnp.dtype(dtype).itemsize


# ---------------------------------------------------------------------------
# Forward: glue (embedding gather + hoisted input projection) in XLA,
# recurrence + attention in the fused Pallas kernel.
# ---------------------------------------------------------------------------
def semantic_embedding_forward(params, enc_feats, input_char, *, padding_idx, d_k):
    l1, l2 = params["lstm"]
    D = params["embedding"].shape[1]
    B, Tq = input_char.shape

    # Embedding lookup, gathered directly time-major (Tq, B, D).
    emb_tbd = jnp.take(params["embedding"], input_char.T, axis=0)

    # Hoisted, gate-packed layer-1 input projection for ALL timesteps (+ bias):
    # one large lane-dense matmul, result (Tq, B, 4D).
    gx1 = jnp.einsum("tbd,dg->tbg", emb_tbd.astype(jnp.bfloat16), l1["w_ih"],
                     preferred_element_type=jnp.float32) + l1["b"]

    # Tiny pad flag (B, Tq, 1); the full (B, Tq, Tk) mask is built in-kernel.
    pad = (input_char != padding_idx).astype(jnp.int32)[:, :, None]
    enc_bf = enc_feats.astype(jnp.bfloat16)            # V  : (B, Tk, D)
    enc_t = jnp.swapaxes(enc_bf, 1, 2)                 # K^T: (B, D, Tk) — one transpose, in XLA

    operands = (gx1, l1["w_hh"], l2["w"], l2["b"], enc_bf, enc_t, pad)
    out_shape = jax.ShapeDtypeStruct((B, Tq, D), jnp.float32)

    vmem = sum(_padded_bytes(x.shape, x.dtype) for x in operands)
    vmem += _padded_bytes(out_shape.shape, out_shape.dtype)
    vmem += _padded_bytes((B, Tq, D), jnp.bfloat16)          # scratch
    vmem_limit = int(min(max(2 * vmem + (1 << 20), 8 << 20), 64 << 20))

    # NOTE: ScaledDotProductAttention is constructed with temperature = d_k in the
    # reference module, i.e. scores are divided by d_k (not sqrt(d_k)).
    kernel = functools.partial(_semantic_kernel, inv_temp=1.0 / float(d_k))
    return pl.pallas_call(
        kernel,
        out_shape=out_shape,
        scratch_shapes=[pltpu.VMEM((B, Tq, D), jnp.bfloat16)],   # LSTM output stays in VMEM
        compiler_params=pltpu.CompilerParams(vmem_limit_bytes=vmem_limit),
    )(*operands)


def init_params(key, num_classes, d_model, rnn_layers):
    assert rnn_layers == 2
    keys = jax.random.split(key, 1 + 4 * rnn_layers)
    params = {"embedding": 0.02 * jax.random.normal(
        keys[0], (num_classes, d_model), dtype=jnp.float32)}
    scale = 1.0 / (d_model ** 0.5)
    raw = []
    for l in range(rnn_layers):
        k0, k1, k2, k3 = keys[1 + 4 * l: 5 + 4 * l]
        # Gate-packed layout, column order i|f|g|o:
        #   w_ih == PyTorch weight_ih_l{l}.T so x @ w_ih gives all 4 gate
        #   pre-activations packed along the last dim (same for w_hh).
        w_ih = jax.random.uniform(k0, (d_model, 4 * d_model), jnp.float32, -scale, scale)
        w_hh = jax.random.uniform(k1, (d_model, 4 * d_model), jnp.float32, -scale, scale)
        b = (jax.random.uniform(k2, (1, 4 * d_model), jnp.float32, -scale, scale)
             + jax.random.uniform(k3, (1, 4 * d_model), jnp.float32, -scale, scale))
        raw.append((w_ih, w_hh, b))
    l1 = {"w_ih": raw[0][0].astype(jnp.bfloat16),                 # (D, 4D)
          "w_hh": raw[0][1].astype(jnp.bfloat16),                 # (D, 4D)
          "b": raw[0][2]}                                         # (1, 4D) f32
    l2 = {"w": jnp.concatenate([raw[1][0], raw[1][1]],            # (2D, 4D): [W_ih2; W_hh2]
                               axis=0).astype(jnp.bfloat16),
          "b": raw[1][2]}                                         # (1, 4D) f32
    params["lstm"] = (l1, l2)
    # self.linear exists in __init__ but is unused in forward — not needed.
    return params


if __name__ == "__main__":
    # Small shapes consistent with the module.
    B, Tq, Tk = 2, 8, 16
    d_model, num_classes, rnn_layers = 32, 40, 2
    d_k, padding_idx = 64, 1

    key = jax.random.PRNGKey(0)
    k_param, k_feat, k_char = jax.random.split(key, 3)

    params = init_params(k_param, num_classes, d_model, rnn_layers)
    enc_feats = jax.random.normal(k_feat, (B, Tk, d_model), dtype=jnp.float32)
    input_char = jax.random.randint(k_char, (B, Tq), 0, num_classes, dtype=jnp.int32)
    # Put a couple of padding tokens in to exercise the pad mask.
    input_char = input_char.at[:, -2:].set(padding_idx)

    out = semantic_embedding_forward(params, enc_feats, input_char,
                                     padding_idx=padding_idx, d_k=d_k)
    out = jax.block_until_ready(out)

    assert out.shape == (B, Tq, d_model), out.shape
    assert bool(jnp.all(jnp.isfinite(out)))
    print("KERNEL_OK")
</pallas_src>

<mosaic_0001>
module attributes {stable_mosaic.version = 11 : i64} {
  func.func @_semantic_kernel(%arg0: memref<8x2x128xf32, #tpu.memory_space<vmem>>, %arg1: memref<32x128xbf16, #tpu.memory_space<vmem>>, %arg2: memref<64x128xbf16, #tpu.memory_space<vmem>>, %arg3: memref<1x128xf32, #tpu.memory_space<vmem>>, %arg4: memref<2x16x32xbf16, #tpu.memory_space<vmem>>, %arg5: memref<2x32x16xbf16, #tpu.memory_space<vmem>>, %arg6: memref<2x8x1xi32, #tpu.memory_space<vmem>>, %arg7: memref<2x8x32xf32, #tpu.memory_space<vmem>>, %arg8: memref<2x8x32xbf16, #tpu.memory_space<vmem>>) attributes {dimension_semantics = [], scalar_prefetch = 0 : i64, scratch_operands = 1 : i64, tpu.core_type = #tpu.core_type<tc>} {
    %c0 = arith.constant 0 : index
    %c0_0 = arith.constant 0 : index
    %0 = vector.load %arg1[%c0, %c0_0] : memref<32x128xbf16, #tpu.memory_space<vmem>>, vector<32x128xbf16>
    %c0_1 = arith.constant 0 : index
    %c0_2 = arith.constant 0 : index
    %1 = vector.load %arg2[%c0_1, %c0_2] : memref<64x128xbf16, #tpu.memory_space<vmem>>, vector<64x128xbf16>
    %c0_3 = arith.constant 0 : index
    %c0_4 = arith.constant 0 : index
    %2 = vector.load %arg3[%c0_3, %c0_4] : memref<1x128xf32, #tpu.memory_space<vmem>>, vector<1x128xf32>
    %3 = vector.shape_cast %2 : vector<1x128xf32> to vector<1x128xf32>
    %4 = vector.broadcast %3 : vector<1x128xf32> to vector<2x128xf32>
    %cst = arith.constant 0.000000e+00 : f32
    %5 = vector.broadcast %cst : f32 to vector<2x32xf32>
    %cst_5 = arith.constant 0.000000e+00 : f32
    %6 = vector.broadcast %cst_5 : f32 to vector<2x32xf32>
    %cst_6 = arith.constant 0.000000e+00 : f32
    %7 = vector.broadcast %cst_6 : f32 to vector<2x32xf32>
    %cst_7 = arith.constant 0.000000e+00 : f32
    %8 = vector.broadcast %cst_7 : f32 to vector<2x32xf32>
    %c0_8 = arith.constant 0 : index
    %c0_9 = arith.constant 0 : index
    %c0_10 = arith.constant 0 : index
    %9 = vector.load %arg0[%c0_8, %c0_9, %c0_10] : memref<8x2x128xf32, #tpu.memory_space<vmem>>, vector<1x2x128xf32>
    %10 = vector.shape_cast %9 : vector<1x2x128xf32> to vector<2x128xf32>
    %11 = arith.truncf %5 : vector<2x32xf32> to vector<2x32xbf16>
    %cst_11 = arith.constant dense<0.000000e+00> : vector<2x128xf32>
    %12 = tpu.matmul %11, %0, %cst_11 {dimension_numbers = #tpu.dot_dimension_numbers<[1], [0], [0], [1], [0, 0, 1, 1], [], []>} : vector<2x32xbf16>, vector<32x128xbf16>, vector<2x128xf32> -> vector<2x128xf32>
    %13 = arith.addf %10, %12 : vector<2x128xf32>
    %14 = arith.negf %13 : vector<2x128xf32>
    %15 = math.exp %14 : vector<2x128xf32>
    %cst_12 = arith.constant 1.000000e+00 : f32
    %16 = vector.broadcast %cst_12 : f32 to vector<2x128xf32>
    %17 = arith.addf %16, %15 : vector<2x128xf32>
    %18 = arith.divf %16, %17 : vector<2x128xf32>
    %19 = math.tanh %13 : vector<2x128xf32>
    %20 = vector.extract_strided_slice %18 {offsets = [0, 32], sizes = [2, 32], strides = [1, 1]} : vector<2x128xf32> to vector<2x32xf32>
    %21 = arith.mulf %20, %6 : vector<2x32xf32>
    %22 = vector.extract_strided_slice %18 {offsets = [0, 0], sizes = [2, 32], strides = [1, 1]} : vector<2x128xf32> to vector<2x32xf32>
    %23 = vector.extract_strided_slice %19 {offsets = [0, 64], sizes = [2, 32], strides = [1, 1]} : vector<2x128xf32> to vector<2x32xf32>
    %24 = arith.mulf %22, %23 : vector<2x32xf32>
    %25 = arith.addf %21, %24 : vector<2x32xf32>
    %26 = vector.extract_strided_slice %18 {offsets = [0, 96], sizes = [2, 32], strides = [1, 1]} : vector<2x128xf32> to vector<2x32xf32>
    %27 = math.tanh %25 : vector<2x32xf32>
    %28 = arith.mulf %26, %27 : vector<2x32xf32>
    %29 = tpu.concatenate %28, %7 in 1 : vector<2x32xf32>, vector<2x32xf32> -> vector<2x64xf32>
    %30 = arith.truncf %29 : vector<2x64xf32> to vector<2x64xbf16>
    %cst_13 = arith.constant dense<0.000000e+00> : vector<2x128xf32>
    %31 = tpu.matmul %30, %1, %cst_13 {dimension_numbers = #tpu.dot_dimension_numbers<[1], [0], [0], [1], [0, 0, 1, 1], [], []>} : vector<2x64xbf16>, vector<64x128xbf16>, vector<2x128xf32> -> vector<2x128xf32>
    %32 = arith.addf %4, %31 : vector<2x128xf32>
    %33 = arith.negf %32 : vector<2x128xf32>
    %34 = math.exp %33 : vector<2x128xf32>
    %cst_14 = arith.constant 1.000000e+00 : f32
    %35 = vector.broadcast %cst_14 : f32 to vector<2x128xf32>
    %36 = arith.addf %35, %34 : vector<2x128xf32>
    %37 = arith.divf %35, %36 : vector<2x128xf32>
    %38 = math.tanh %32 : vector<2x128xf32>
    %39 = vector.extract_strided_slice %37 {offsets = [0, 32], sizes = [2, 32], strides = [1, 1]} : vector<2x128xf32> to vector<2x32xf32>
    %40 = arith.mulf %39, %8 : vector<2x32xf32>
    %41 = vector.extract_strided_slice %37 {offsets = [0, 0], sizes = [2, 32], strides = [1, 1]} : vector<2x128xf32> to vector<2x32xf32>
    %42 = vector.extract_strided_slice %38 {offsets = [0, 64], sizes = [2, 32], strides = [1, 1]} : vector<2x128xf32> to vector<2x32xf32>
    %43 = arith.mulf %41, %42 : vector<2x32xf32>
    %44 = arith.addf %40, %43 : vector<2x32xf32>
    %45 = vector.extract_strided_slice %37 {offsets = [0, 96], sizes = [2, 32], strides = [1, 1]} : vector<2x128xf32> to vector<2x32xf32>
    %46 = math.tanh %44 : vector<2x32xf32>
    %47 = arith.mulf %45, %46 : vector<2x32xf32>
    %48 = arith.truncf %47 : vector<2x32xf32> to vector<2x32xbf16>
    %49 = vector.shape_cast %48 : vector<2x32xbf16> to vector<2x1x32xbf16>
    %c0_15 = arith.constant 0 : index
    %c0_16 = arith.constant 0 : index
    %c0_17 = arith.constant 0 : index
    %50 = vector.load %arg8[%c0_15, %c0_16, %c0_17] : memref<2x8x32xbf16, #tpu.memory_space<vmem>>, vector<2x1x32xbf16>
    tpu.vector_store %arg8[%c0_15, %c0_16, %c0_17], %49 {strides = array<i32>} : memref<2x8x32xbf16, #tpu.memory_space<vmem>>, vector<2x1x32xbf16>,
    %c1 = arith.constant 1 : index
    %c0_18 = arith.constant 0 : index
    %c0_19 = arith.constant 0 : index
    %51 = vector.load %arg0[%c1, %c0_18, %c0_19] : memref<8x2x128xf32, #tpu.memory_space<vmem>>, vector<1x2x128xf32>
    %52 = vector.shape_cast %51 : vector<1x2x128xf32> to vector<2x128xf32>
    %53 = arith.truncf %28 : vector<2x32xf32> to vector<2x32xbf16>
    %cst_20 = arith.constant dense<0.000000e+00> : vector<2x128xf32>
    %54 = tpu.matmul %53, %0, %cst_20 {dimension_numbers = #tpu.dot_dimension_numbers<[1], [0], [0], [1], [0, 0, 1, 1], [], []>} : vector<2x32xbf16>, vector<32x128xbf16>, vector<2x128xf32> -> vector<2x128xf32>
    %55 = arith.addf %52, %54 : vector<2x128xf32>
    %56 = arith.negf %55 : vector<2x128xf32>
    %57 = math.exp %56 : vector<2x128xf32>
    %cst_21 = arith.constant 1.000000e+00 : f32
    %58 = vector.broadcast %cst_21 : f32 to vector<2x128xf32>
    %59 = arith.addf %58, %57 : vector<2x128xf32>
    %60 = arith.divf %58, %59 : vector<2x128xf32>
    %61 = math.tanh %55 : vector<2x128xf32>
    %62 = vector.extract_strided_slice %60 {offsets = [0, 32], sizes = [2, 32], strides = [1, 1]} : vector<2x128xf32> to vector<2x32xf32>
    %63 = arith.mulf %62, %25 : vector<2x32xf32>
    %64 = vector.extract_strided_slice %60 {offsets = [0, 0], sizes = [2, 32], strides = [1, 1]} : vector<2x128xf32> to vector<2x32xf32>
    %65 = vector.extract_strided_slice %61 {offsets = [0, 64], sizes = [2, 32], strides = [1, 1]} : vector<2x128xf32> to vector<2x32xf32>
    %66 = arith.mulf %64, %65 : vector<2x32xf32>
    %67 = arith.addf %63, %66 : vector<2x32xf32>
    %68 = vector.extract_strided_slice %60 {offsets = [0, 96], sizes = [2, 32], strides = [1, 1]} : vector<2x128xf32> to vector<2x32xf32>
    %69 = math.tanh %67 : vector<2x32xf32>
    %70 = arith.mulf %68, %69 : vector<2x32xf32>
    %71 = tpu.concatenate %70, %47 in 1 : vector<2x32xf32>, vector<2x32xf32> -> vector<2x64xf32>
    %72 = arith.truncf %71 : vector<2x64xf32> to vector<2x64xbf16>
    %cst_22 = arith.constant dense<0.000000e+00> : vector<2x128xf32>
    %73 = tpu.matmul %72, %1, %cst_22 {dimension_numbers = #tpu.dot_dimension_numbers<[1], [0], [0], [1], [0, 0, 1, 1], [], []>} : vector<2x64xbf16>, vector<64x128xbf16>, vector<2x128xf32> -> vector<2x128xf32>
    %74 = arith.addf %4, %73 : vector<2x128xf32>
    %75 = arith.negf %74 : vector<2x128xf32>
    %76 = math.exp %75 : vector<2x128xf32>
    %cst_23 = arith.constant 1.000000e+00 : f32
    %77 = vector.broadcast %cst_23 : f32 to vector<2x128xf32>
    %78 = arith.addf %77, %76 : vector<2x128xf32>
    %79 = arith.divf %77, %78 : vector<2x128xf32>
    %80 = math.tanh %74 : vector<2x128xf32>
    %81 = vector.extract_strided_slice %79 {offsets = [0, 32], sizes = [2, 32], strides = [1, 1]} : vector<2x128xf32> to vector<2x32xf32>
    %82 = arith.mulf %81, %44 : vector<2x32xf32>
    %83 = vector.extract_strided_slice %79 {offsets = [0, 0], sizes = [2, 32], strides = [1, 1]} : vector<2x128xf32> to vector<2x32xf32>
    %84 = vector.extract_strided_slice %80 {offsets = [0, 64], sizes = [2, 32], strides = [1, 1]} : vector<2x128xf32> to vector<2x32xf32>
    %85 = arith.mulf %83, %84 : vector<2x32xf32>
    %86 = arith.addf %82, %85 : vector<2x32xf32>
    %87 = vector.extract_strided_slice %79 {offsets = [0, 96], sizes = [2, 32], strides = [1, 1]} : vector<2x128xf32> to vector<2x32xf32>
    %88 = math.tanh %86 : vector<2x32xf32>
    %89 = arith.mulf %87, %88 : vector<2x32xf32>
    %90 = arith.truncf %89 : vector<2x32xf32> to vector<2x32xbf16>
    %91 = vector.shape_cast %90 : vector<2x32xbf16> to vector<2x1x32xbf16>
    %c0_24 = arith.constant 0 : index
    %c1_25 = arith.constant 1 : index
    %c0_26 = arith.constant 0 : index
    %92 = vector.load %arg8[%c0_24, %c1_25, %c0_26] : memref<2x8x32xbf16, #tpu.memory_space<vmem>>, vector<2x1x32xbf16>
    tpu.vector_store %arg8[%c0_24, %c1_25, %c0_26], %91 {strides = array<i32>} : memref<2x8x32xbf16, #tpu.memory_space<vmem>>, vector<2x1x32xbf16>,
    %c2 = arith.constant 2 : index
    %c0_27 = arith.constant 0 : index
    %c0_28 = arith.constant 0 : index
    %93 = vector.load %arg0[%c2, %c0_27, %c0_28] : memref<8x2x128xf32, #tpu.memory_space<vmem>>, vector<1x2x128xf32>
    %94 = vector.shape_cast %93 : vector<1x2x128xf32> to vector<2x128xf32>
    %95 = arith.truncf %70 : vector<2x32xf32> to vector<2x32xbf16>
    %cst_29 = arith.constant dense<0.000000e+00> : vector<2x128xf32>
    %96 = tpu.matmul %95, %0, %cst_29 {dimension_numbers = #tpu.dot_dimension_numbers<[1], [0], [0], [1], [0, 0, 1, 1], [], []>} : vector<2x32xbf16>, vector<32x128xbf16>, vector<2x128xf32> -> vector<2x128xf32>
    %97 = arith.addf %94, %96 : vector<2x128xf32>
    %98 = arith.negf %97 : vector<2x128xf32>
    %99 = math.exp %98 : vector<2x128xf32>
    %cst_30 = arith.constant 1.000000e+00 : f32
    %100 = vector.broadcast %cst_30 : f32 to vector<2x128xf32>
    %101 = arith.addf %100, %99 : vector<2x128xf32>
    %102 = arith.divf %100, %101 : vector<2x128xf32>
    %103 = math.tanh %97 : vector<2x128xf32>
    %104 = vector.extract_strided_slice %102 {offsets = [0, 32], sizes = [2, 32], strides = [1, 1]} : vector<2x128xf32> to vector<2x32xf32>
    %105 = arith.mulf %104, %67 : vector<2x32xf32>
    %106 = vector.extract_strided_slice %102 {offsets = [0, 0], sizes = [2, 32], strides = [1, 1]} : vector<2x128xf32> to vector<2x32xf32>
    %107 = vector.extract_strided_slice %103 {offsets = [0, 64], sizes = [2, 32], strides = [1, 1]} : vector<2x128xf32> to vector<2x32xf32>
    %108 = arith.mulf %106, %107 : vector<2x32xf32>
    %109 = arith.addf %105, %108 : vector<2x32xf32>
    %110 = vector.extract_strided_slice %102 {offsets = [0, 96], sizes = [2, 32], strides = [1, 1]} : vector<2x128xf32> to vector<2x32xf32>
    %111 = math.tanh %109 : vector<2x32xf32>
    %112 = arith.mulf %110, %111 : vector<2x32xf32>
    %113 = tpu.concatenate %112, %89 in 1 : vector<2x32xf32>, vector<2x32xf32> -> vector<2x64xf32>
    %114 = arith.truncf %113 : vector<2x64xf32> to vector<2x64xbf16>
    %cst_31 = arith.constant dense<0.000000e+00> : vector<2x128xf32>
    %115 = tpu.matmul %114, %1, %cst_31 {dimension_numbers = #tpu.dot_dimension_numbers<[1], [0], [0], [1], [0, 0, 1, 1], [], []>} : vector<2x64xbf16>, vector<64x128xbf16>, vector<2x128xf32> -> vector<2x128xf32>
    %116 = arith.addf %4, %115 : vector<2x128xf32>
    %117 = arith.negf %116 : vector<2x128xf32>
    %118 = math.exp %117 : vector<2x128xf32>
    %cst_32 = arith.constant 1.000000e+00 : f32
    %119 = vector.broadcast %cst_32 : f32 to vector<2x128xf32>
    %120 = arith.addf %119, %118 : vector<2x128xf32>
    %121 = arith.divf %119, %120 : vector<2x128xf32>
    %122 = math.tanh %116 : vector<2x128xf32>
    %123 = vector.extract_strided_slice %121 {offsets = [0, 32], sizes = [2, 32], strides = [1, 1]} : vector<2x128xf32> to vector<2x32xf32>
    %124 = arith.mulf %123, %86 : vector<2x32xf32>
    %125 = vector.extract_strided_slice %121 {offsets = [0, 0], sizes = [2, 32], strides = [1, 1]} : vector<2x128xf32> to vector<2x32xf32>
    %126 = vector.extract_strided_slice %122 {offsets = [0, 64], sizes = [2, 32], strides = [1, 1]} : vector<2x128xf32> to vector<2x32xf32>
    %127 = arith.mulf %125, %126 : vector<2x32xf32>
    %128 = arith.addf %124, %127 : vector<2x32xf32>
    %129 = vector.extract_strided_slice %121 {offsets = [0, 96], sizes = [2, 32], strides = [1, 1]} : vector<2x128xf32> to vector<2x32xf32>
    %130 = math.tanh %128 : vector<2x32xf32>
    %131 = arith.mulf %129, %130 : vector<2x32xf32>
    %132 = arith.truncf %131 : vector<2x32xf32> to vector<2x32xbf16>
    %133 = vector.shape_cast %132 : vector<2x32xbf16> to vector<2x1x32xbf16>
    %c0_33 = arith.constant 0 : index
    %c2_34 = arith.constant 2 : index
    %c0_35 = arith.constant 0 : index
    %134 = vector.load %arg8[%c0_33, %c2_34, %c0_35] : memref<2x8x32xbf16, #tpu.memory_space<vmem>>, vector<2x1x32xbf16>
    tpu.vector_store %arg8[%c0_33, %c2_34, %c0_35], %133 {strides = array<i32>} : memref<2x8x32xbf16, #tpu.memory_space<vmem>>, vector<2x1x32xbf16>,
    %c3 = arith.constant 3 : index
    %c0_36 = arith.constant 0 : index
    %c0_37 = arith.constant 0 : index
    %135 = vector.load %arg0[%c3, %c0_36, %c0_37] : memref<8x2x128xf32, #tpu.memory_space<vmem>>, vector<1x2x128xf32>
    %136 = vector.shape_cast %135 : vector<1x2x128xf32> to vector<2x128xf32>
    %137 = arith.truncf %112 : vector<2x32xf32> to vector<2x32xbf16>
    %cst_38 = arith.constant dense<0.000000e+00> : vector<2x128xf32>
    %138 = tpu.matmul %137, %0, %cst_38 {dimension_numbers = #tpu.dot_dimension_numbers<[1], [0], [0], [1], [0, 0, 1, 1], [], []>} : vector<2x32xbf16>, vector<32x128xbf16>, vector<2x128xf32> -> vector<2x128xf32>
    %139 = arith.addf %136, %138 : vector<2x128xf32>
    %140 = arith.negf %139 : vector<2x128xf32>
    %141 = math.exp %140 : vector<2x128xf32>
    %cst_39 = arith.constant 1.000000e+00 : f32
    %142 = vector.broadcast %cst_39 : f32 to vector<2x128xf32>
    %143 = arith.addf %142, %141 : vector<2x128xf32>
    %144 = arith.divf %142, %143 : vector<2x128xf32>
    %145 = math.tanh %139 : vector<2x128xf32>
    %146 = vector.extract_strided_slice %144 {offsets = [0, 32], sizes = [2, 32], strides = [1, 1]} : vector<2x128xf32> to vector<2x32xf32>
    %147 = arith.mulf %146, %109 : vector<2x32xf32>
    %148 = vector.extract_strided_slice %144 {offsets = [0, 0], sizes = [2, 32], strides = [1, 1]} : vector<2x128xf32> to vector<2x32xf32>
    %149 = vector.extract_strided_slice %145 {offsets = [0, 64], sizes = [2, 32], strides = [1, 1]} : vector<2x128xf32> to vector<2x32xf32>
    %150 = arith.mulf %148, %149 : vector<2x32xf32>
    %151 = arith.addf %147, %150 : vector<2x32xf32>
    %152 = vector.extract_strided_slice %144 {offsets = [0, 96], sizes = [2, 32], strides = [1, 1]} : vector<2x128xf32> to vector<2x32xf32>
    %153 = math.tanh %151 : vector<2x32xf32>
    %154 = arith.mulf %152, %153 : vector<2x32xf32>
    %155 = tpu.concatenate %154, %131 in 1 : vector<2x32xf32>, vector<2x32xf32> -> vector<2x64xf32>
    %156 = arith.truncf %155 : vector<2x64xf32> to vector<2x64xbf16>
    %cst_40 = arith.constant dense<0.000000e+00> : vector<2x128xf32>
    %157 = tpu.matmul %156, %1, %cst_40 {dimension_numbers = #tpu.dot_dimension_numbers<[1], [0], [0], [1], [0, 0, 1, 1], [], []>} : vector<2x64xbf16>, vector<64x128xbf16>, vector<2x128xf32> -> vector<2x128xf32>
    %158 = arith.addf %4, %157 : vector<2x128xf32>
    %159 = arith.negf %158 : vector<2x128xf32>
    %160 = math.exp %159 : vector<2x128xf32>
    %cst_41 = arith.constant 1.000000e+00 : f32
    %161 = vector.broadcast %cst_41 : f32 to vector<2x128xf32>
    %162 = arith.addf %161, %160 : vector<2x128xf32>
    %163 = arith.divf %161, %162 : vector<2x128xf32>
    %164 = math.tanh %158 : vector<2x128xf32>
    %165 = vector.extract_strided_slice %163 {offsets = [0, 32], sizes = [2, 32], strides = [1, 1]} : vector<2x128xf32> to vector<2x32xf32>
    %166 = arith.mulf %165, %128 : vector<2x32xf32>
    %167 = vector.extract_strided_slice %163 {offsets = [0, 0], sizes = [2, 32], strides = [1, 1]} : vector<2x128xf32> to vector<2x32xf32>
    %168 = vector.extract_strided_slice %164 {offsets = [0, 64], sizes = [2, 32], strides = [1, 1]} : vector<2x128xf32> to vector<2x32xf32>
    %169 = arith.mulf %167, %168 : vector<2x32xf32>
    %170 = arith.addf %166, %169 : vector<2x32xf32>
    %171 = vector.extract_strided_slice %163 {offsets = [0, 96], sizes = [2, 32], strides = [1, 1]} : vector<2x128xf32> to vector<2x32xf32>
    %172 = math.tanh %170 : vector<2x32xf32>
    %173 = arith.mulf %171, %172 : vector<2x32xf32>
    %174 = arith.truncf %173 : vector<2x32xf32> to vector<2x32xbf16>
    %175 = vector.shape_cast %174 : vector<2x32xbf16> to vector<2x1x32xbf16>
    %c0_42 = arith.constant 0 : index
    %c3_43 = arith.constant 3 : index
    %c0_44 = arith.constant 0 : index
    %176 = vector.load %arg8[%c0_42, %c3_43, %c0_44] : memref<2x8x32xbf16, #tpu.memory_space<vmem>>, vector<2x1x32xbf16>
    tpu.vector_store %arg8[%c0_42, %c3_43, %c0_44], %175 {strides = array<i32>} : memref<2x8x32xbf16, #tpu.memory_space<vmem>>, vector<2x1x32xbf16>,
    %c4 = arith.constant 4 : index
    %c0_45 = arith.constant 0 : index
    %c0_46 = arith.constant 0 : index
    %177 = vector.load %arg0[%c4, %c0_45, %c0_46] : memref<8x2x128xf32, #tpu.memory_space<vmem>>, vector<1x2x128xf32>
    %178 = vector.shape_cast %177 : vector<1x2x128xf32> to vector<2x128xf32>
    %179 = arith.truncf %154 : vector<2x32xf32> to vector<2x32xbf16>
    %cst_47 = arith.constant dense<0.000000e+00> : vector<2x128xf32>
    %180 = tpu.matmul %179, %0, %cst_47 {dimension_numbers = #tpu.dot_dimension_numbers<[1], [0], [0], [1], [0, 0, 1, 1], [], []>} : vector<2x32xbf16>, vector<32x128xbf16>, vector<2x128xf32> -> vector<2x128xf32>
    %181 = arith.addf %178, %180 : vector<2x128xf32>
    %182 = arith.negf %181 : vector<2x128xf32>
    %183 = math.exp %182 : vector<2x128xf32>
    %cst_48 = arith.constant 1.000000e+00 : f32
    %184 = vector.broadcast %cst_48 : f32 to vector<2x128xf32>
    %185 = arith.addf %184, %183 : vector<2x128xf32>
    %186 = arith.divf %184, %185 : vector<2x128xf32>
    %187 = math.tanh %181 : vector<2x128xf32>
    %188 = vector.extract_strided_slice %186 {offsets = [0, 32], sizes = [2, 32], strides = [1, 1]} : vector<2x128xf32> to vector<2x32xf32>
    %189 = arith.mulf %188, %151 : vector<2x32xf32>
    %190 = vector.extract_strided_slice %186 {offsets = [0, 0], sizes = [2, 32], strides = [1, 1]} : vector<2x128xf32> to vector<2x32xf32>
    %191 = vector.extract_strided_slice %187 {offsets = [0, 64], sizes = [2, 32], strides = [1, 1]} : vector<2x128xf32> to vector<2x32xf32>
    %192 = arith.mulf %190, %191 : vector<2x32xf32>
    %193 = arith.addf %189, %192 : vector<2x32xf32>
    %194 = vector.extract_strided_slice %186 {offsets = [0, 96], sizes = [2, 32], strides = [1, 1]} : vector<2x128xf32> to vector<2x32xf32>
    %195 = math.tanh %193 : vector<2x32xf32>
    %196 = arith.mulf %194, %195 : vector<2x32xf32>
    %197 = tpu.concatenate %196, %173 in 1 : vector<2x32xf32>, vector<2x32xf32> -> vector<2x64xf32>
    %198 = arith.truncf %197 : vector<2x64xf32> to vector<2x64xbf16>
    %cst_49 = arith.constant dense<0.000000e+00> : vector<2x128xf32>
    %199 = tpu.matmul %198, %1, %cst_49 {dimension_numbers = #tpu.dot_dimension_numbers<[1], [0], [0], [1], [0, 0, 1, 1], [], []>} : vector<2x64xbf16>, vector<64x128xbf16>, vector<2x128xf32> -> vector<2x128xf32>
    %200 = arith.addf %4, %199 : vector<2x128xf32>
    %201 = arith.negf %200 : vector<2x128xf32>
    %202 = math.exp %201 : vector<2x128xf32>
    %cst_50 = arith.constant 1.000000e+00 : f32
    %203 = vector.broadcast %cst_50 : f32 to vector<2x128xf32>
    %204 = arith.addf %203, %202 : vector<2x128xf32>
    %205 = arith.divf %203, %204 : vector<2x128xf32>
    %206 = math.tanh %200 : vector<2x128xf32>
    %207 = vector.extract_strided_slice %205 {offsets = [0, 32], sizes = [2, 32], strides = [1, 1]} : vector<2x128xf32> to vector<2x32xf32>
    %208 = arith.mulf %207, %170 : vector<2x32xf32>
    %209 = vector.extract_strided_slice %205 {offsets = [0, 0], sizes = [2, 32], strides = [1, 1]} : vector<2x128xf32> to vector<2x32xf32>
    %210 = vector.extract_strided_slice %206 {offsets = [0, 64], sizes = [2, 32], strides = [1, 1]} : vector<2x128xf32> to vector<2x32xf32>
    %211 = arith.mulf %209, %210 : vector<2x32xf32>
    %212 = arith.addf %208, %211 : vector<2x32xf32>
    %213 = vector.extract_strided_slice %205 {offsets = [0, 96], sizes = [2, 32], strides = [1, 1]} : vector<2x128xf32> to vector<2x32xf32>
    %214 = math.tanh %212 : vector<2x32xf32>
    %215 = arith.mulf %213, %214 : vector<2x32xf32>
    %216 = arith.truncf %215 : vector<2x32xf32> to vector<2x32xbf16>
    %217 = vector.shape_cast %216 : vector<2x32xbf16> to vector<2x1x32xbf16>
    %c0_51 = arith.constant 0 : index
    %c4_52 = arith.constant 4 : index
    %c0_53 = arith.constant 0 : index
    %218 = vector.load %arg8[%c0_51, %c4_52, %c0_53] : memref<2x8x32xbf16, #tpu.memory_space<vmem>>, vector<2x1x32xbf16>
    tpu.vector_store %arg8[%c0_51, %c4_52, %c0_53], %217 {strides = array<i32>} : memref<2x8x32xbf16, #tpu.memory_space<vmem>>, vector<2x1x32xbf16>,
    %c5 = arith.constant 5 : index
    %c0_54 = arith.constant 0 : index
    %c0_55 = arith.constant 0 : index
    %219 = vector.load %arg0[%c5, %c0_54, %c0_55] : memref<8x2x128xf32, #tpu.memory_space<vmem>>, vector<1x2x128xf32>
    %220 = vector.shape_cast %219 : vector<1x2x128xf32> to vector<2x128xf32>
    %221 = arith.truncf %196 : vector<2x32xf32> to vector<2x32xbf16>
    %cst_56 = arith.constant dense<0.000000e+00> : vector<2x128xf32>
    %222 = tpu.matmul %221, %0, %cst_56 {dimension_numbers = #tpu.dot_dimension_numbers<[1], [0], [0], [1], [0, 0, 1, 1], [], []>} : vector<2x32xbf16>, vector<32x128xbf16>, vector<2x128xf32> -> vector<2x128xf32>
    %223 = arith.addf %220, %222 : vector<2x128xf32>
    %224 = arith.negf %223 : vector<2x128xf32>
    %225 = math.exp %224 : vector<2x128xf32>
    %cst_57 = arith.constant 1.000000e+00 : f32
    %226 = vector.broadcast %cst_57 : f32 to vector<2x128xf32>
    %227 = arith.addf %226, %225 : vector<2x128xf32>
    %228 = arith.divf %226, %227 : vector<2x128xf32>
    %229 = math.tanh %223 : vector<2x128xf32>
    %230 = vector.extract_strided_slice %228 {offsets = [0, 32], sizes = [2, 32], strides = [1, 1]} : vector<2x128xf32> to vector<2x32xf32>
    %231 = arith.mulf %230, %193 : vector<2x32xf32>
    %232 = vector.extract_strided_slice %228 {offsets = [0, 0], sizes = [2, 32], strides = [1, 1]} : vector<2x128xf32> to vector<2x32xf32>
    %233 = vector.extract_strided_slice %229 {offsets = [0, 64], sizes = [2, 32], strides = [1, 1]} : vector<2x128xf32> to vector<2x32xf32>
    %234 = arith.mulf %232, %233 : vector<2x32xf32>
    %235 = arith.addf %231, %234 : vector<2x32xf32>
    %236 = vector.extract_strided_slice %228 {offsets = [0, 96], sizes = [2, 32], strides = [1, 1]} : vector<2x128xf32> to vector<2x32xf32>
    %237 = math.tanh %235 : vector<2x32xf32>
    %238 = arith.mulf %236, %237 : vector<2x32xf32>
    %239 = tpu.concatenate %238, %215 in 1 : vector<2x32xf32>, vector<2x32xf32> -> vector<2x64xf32>
    %240 = arith.truncf %239 : vector<2x64xf32> to vector<2x64xbf16>
    %cst_58 = arith.constant dense<0.000000e+00> : vector<2x128xf32>
    %241 = tpu.matmul %240, %1, %cst_58 {dimension_numbers = #tpu.dot_dimension_numbers<[1], [0], [0], [1], [0, 0, 1, 1], [], []>} : vector<2x64xbf16>, vector<64x128xbf16>, vector<2x128xf32> -> vector<2x128xf32>
    %242 = arith.addf %4, %241 : vector<2x128xf32>
    %243 = arith.negf %242 : vector<2x128xf32>
    %244 = math.exp %243 : vector<2x128xf32>
    %cst_59 = arith.constant 1.000000e+00 : f32
    %245 = vector.broadcast %cst_59 : f32 to vector<2x128xf32>
    %246 = arith.addf %245, %244 : vector<2x128xf32>
    %247 = arith.divf %245, %246 : vector<2x128xf32>
    %248 = math.tanh %242 : vector<2x128xf32>
    %249 = vector.extract_strided_slice %247 {offsets = [0, 32], sizes = [2, 32], strides = [1, 1]} : vector<2x128xf32> to vector<2x32xf32>
    %250 = arith.mulf %249, %212 : vector<2x32xf32>
    %251 = vector.extract_strided_slice %247 {offsets = [0, 0], sizes = [2, 32], strides = [1, 1]} : vector<2x128xf32> to vector<2x32xf32>
    %252 = vector.extract_strided_slice %248 {offsets = [0, 64], sizes = [2, 32], strides = [1, 1]} : vector<2x128xf32> to vector<2x32xf32>
    %253 = arith.mulf %251, %252 : vector<2x32xf32>
    %254 = arith.addf %250, %253 : vector<2x32xf32>
    %255 = vector.extract_strided_slice %247 {offsets = [0, 96], sizes = [2, 32], strides = [1, 1]} : vector<2x128xf32> to vector<2x32xf32>
    %256 = math.tanh %254 : vector<2x32xf32>
    %257 = arith.mulf %255, %256 : vector<2x32xf32>
    %258 = arith.truncf %257 : vector<2x32xf32> to vector<2x32xbf16>
    %259 = vector.shape_cast %258 : vector<2x32xbf16> to vector<2x1x32xbf16>
    %c0_60 = arith.constant 0 : index
    %c5_61 = arith.constant 5 : index
    %c0_62 = arith.constant 0 : index
    %260 = vector.load %arg8[%c0_60, %c5_61, %c0_62] : memref<2x8x32xbf16, #tpu.memory_space<vmem>>, vector<2x1x32xbf16>
    tpu.vector_store %arg8[%c0_60, %c5_61, %c0_62], %259 {strides = array<i32>} : memref<2x8x32xbf16, #tpu.memory_space<vmem>>, vector<2x1x32xbf16>,
    %c6 = arith.constant 6 : index
    %c0_63 = arith.constant 0 : index
    %c0_64 = arith.constant 0 : index
    %261 = vector.load %arg0[%c6, %c0_63, %c0_64] : memref<8x2x128xf32, #tpu.memory_space<vmem>>, vector<1x2x128xf32>
    %262 = vector.shape_cast %261 : vector<1x2x128xf32> to vector<2x128xf32>
    %263 = arith.truncf %238 : vector<2x32xf32> to vector<2x32xbf16>
    %cst_65 = arith.constant dense<0.000000e+00> : vector<2x128xf32>
    %264 = tpu.matmul %263, %0, %cst_65 {dimension_numbers = #tpu.dot_dimension_numbers<[1], [0], [0], [1], [0, 0, 1, 1], [], []>} : vector<2x32xbf16>, vector<32x128xbf16>, vector<2x128xf32> -> vector<2x128xf32>
    %265 = arith.addf %262, %264 : vector<2x128xf32>
    %266 = arith.negf %265 : vector<2x128xf32>
    %267 = math.exp %266 : vector<2x128xf32>
    %cst_66 = arith.constant 1.000000e+00 : f32
    %268 = vector.broadcast %cst_66 : f32 to vector<2x128xf32>
    %269 = arith.addf %268, %267 : vector<2x128xf32>
    %270 = arith.divf %268, %269 : vector<2x128xf32>
    %271 = math.tanh %265 : vector<2x128xf32>
    %272 = vector.extract_strided_slice %270 {offsets = [0, 32], sizes = [2, 32], strides = [1, 1]} : vector<2x128xf32> to vector<2x32xf32>
    %273 = arith.mulf %272, %235 : vector<2x32xf32>
    %274 = vector.extract_strided_slice %270 {offsets = [0, 0], sizes = [2, 32], strides = [1, 1]} : vector<2x128xf32> to vector<2x32xf32>
    %275 = vector.extract_strided_slice %271 {offsets = [0, 64], sizes = [2, 32], strides = [1, 1]} : vector<2x128xf32> to vector<2x32xf32>
    %276 = arith.mulf %274, %275 : vector<2x32xf32>
    %277 = arith.addf %273, %276 : vector<2x32xf32>
    %278 = vector.extract_strided_slice %270 {offsets = [0, 96], sizes = [2, 32], strides = [1, 1]} : vector<2x128xf32> to vector<2x32xf32>
    %279 = math.tanh %277 : vector<2x32xf32>
    %280 = arith.mulf %278, %279 : vector<2x32xf32>
    %281 = tpu.concatenate %280, %257 in 1 : vector<2x32xf32>, vector<2x32xf32> -> vector<2x64xf32>
    %282 = arith.truncf %281 : vector<2x64xf32> to vector<2x64xbf16>
    %cst_67 = arith.constant dense<0.000000e+00> : vector<2x128xf32>
    %283 = tpu.matmul %282, %1, %cst_67 {dimension_numbers = #tpu.dot_dimension_numbers<[1], [0], [0], [1], [0, 0, 1, 1], [], []>} : vector<2x64xbf16>, vector<64x128xbf16>, vector<2x128xf32> -> vector<2x128xf32>
    %284 = arith.addf %4, %283 : vector<2x128xf32>
    %285 = arith.negf %284 : vector<2x128xf32>
    %286 = math.exp %285 : vector<2x128xf32>
    %cst_68 = arith.constant 1.000000e+00 : f32
    %287 = vector.broadcast %cst_68 : f32 to vector<2x128xf32>
    %288 = arith.addf %287, %286 : vector<2x128xf32>
    %289 = arith.divf %287, %288 : vector<2x128xf32>
    %290 = math.tanh %284 : vector<2x128xf32>
    %291 = vector.extract_strided_slice %289 {offsets = [0, 32], sizes = [2, 32], strides = [1, 1]} : vector<2x128xf32> to vector<2x32xf32>
    %292 = arith.mulf %291, %254 : vector<2x32xf32>
    %293 = vector.extract_strided_slice %289 {offsets = [0, 0], sizes = [2, 32], strides = [1, 1]} : vector<2x128xf32> to vector<2x32xf32>
    %294 = vector.extract_strided_slice %290 {offsets = [0, 64], sizes = [2, 32], strides = [1, 1]} : vector<2x128xf32> to vector<2x32xf32>
    %295 = arith.mulf %293, %294 : vector<2x32xf32>
    %296 = arith.addf %292, %295 : vector<2x32xf32>
    %297 = vector.extract_strided_slice %289 {offsets = [0, 96], sizes = [2, 32], strides = [1, 1]} : vector<2x128xf32> to vector<2x32xf32>
    %298 = math.tanh %296 : vector<2x32xf32>
    %299 = arith.mulf %297, %298 : vector<2x32xf32>
    %300 = arith.truncf %299 : vector<2x32xf32> to vector<2x32xbf16>
    %301 = vector.shape_cast %300 : vector<2x32xbf16> to vector<2x1x32xbf16>
    %c0_69 = arith.constant 0 : index
    %c6_70 = arith.constant 6 : index
    %c0_71 = arith.constant 0 : index
    %302 = vector.load %arg8[%c0_69, %c6_70, %c0_71] : memref<2x8x32xbf16, #tpu.memory_space<vmem>>, vector<2x1x32xbf16>
    tpu.vector_store %arg8[%c0_69, %c6_70, %c0_71], %301 {strides = array<i32>} : memref<2x8x32xbf16, #tpu.memory_space<vmem>>, vector<2x1x32xbf16>,
    %c7 = arith.constant 7 : index
    %c0_72 = arith.constant 0 : index
    %c0_73 = arith.constant 0 : index
    %303 = vector.load %arg0[%c7, %c0_72, %c0_73] : memref<8x2x128xf32, #tpu.memory_space<vmem>>, vector<1x2x128xf32>
    %304 = vector.shape_cast %303 : vector<1x2x128xf32> to vector<2x128xf32>
    %305 = arith.truncf %280 : vector<2x32xf32> to vector<2x32xbf16>
    %cst_74 = arith.constant dense<0.000000e+00> : vector<2x128xf32>
    %306 = tpu.matmul %305, %0, %cst_74 {dimension_numbers = #tpu.dot_dimension_numbers<[1], [0], [0], [1], [0, 0, 1, 1], [], []>} : vector<2x32xbf16>, vector<32x128xbf16>, vector<2x128xf32> -> vector<2x128xf32>
    %307 = arith.addf %304, %306 : vector<2x128xf32>
    %308 = arith.negf %307 : vector<2x128xf32>
    %309 = math.exp %308 : vector<2x128xf32>
    %cst_75 = arith.constant 1.000000e+00 : f32
    %310 = vector.broadcast %cst_75 : f32 to vector<2x128xf32>
    %311 = arith.addf %310, %309 : vector<2x128xf32>
    %312 = arith.divf %310, %311 : vector<2x128xf32>
    %313 = math.tanh %307 : vector<2x128xf32>
    %314 = vector.extract_strided_slice %312 {offsets = [0, 32], sizes = [2, 32], strides = [1, 1]} : vector<2x128xf32> to vector<2x32xf32>
    %315 = arith.mulf %314, %277 : vector<2x32xf32>
    %316 = vector.extract_strided_slice %312 {offsets = [0, 0], sizes = [2, 32], strides = [1, 1]} : vector<2x128xf32> to vector<2x32xf32>
    %317 = vector.extract_strided_slice %313 {offsets = [0, 64], sizes = [2, 32], strides = [1, 1]} : vector<2x128xf32> to vector<2x32xf32>
    %318 = arith.mulf %316, %317 : vector<2x32xf32>
    %319 = arith.addf %315, %318 : vector<2x32xf32>
    %320 = vector.extract_strided_slice %312 {offsets = [0, 96], sizes = [2, 32], strides = [1, 1]} : vector<2x128xf32> to vector<2x32xf32>
    %321 = math.tanh %319 : vector<2x32xf32>
    %322 = arith.mulf %320, %321 : vector<2x32xf32>
    %323 = tpu.concatenate %322, %299 in 1 : vector<2x32xf32>, vector<2x32xf32> -> vector<2x64xf32>
    %324 = arith.truncf %323 : vector<2x64xf32> to vector<2x64xbf16>
    %cst_76 = arith.constant dense<0.000000e+00> : vector<2x128xf32>
    %325 = tpu.matmul %324, %1, %cst_76 {dimension_numbers = #tpu.dot_dimension_numbers<[1], [0], [0], [1], [0, 0, 1, 1], [], []>} : vector<2x64xbf16>, vector<64x128xbf16>, vector<2x128xf32> -> vector<2x128xf32>
    %326 = arith.addf %4, %325 : vector<2x128xf32>
    %327 = arith.negf %326 : vector<2x128xf32>
    %328 = math.exp %327 : vector<2x128xf32>
    %cst_77 = arith.constant 1.000000e+00 : f32
    %329 = vector.broadcast %cst_77 : f32 to vector<2x128xf32>
    %330 = arith.addf %329, %328 : vector<2x128xf32>
    %331 = arith.divf %329, %330 : vector<2x128xf32>
    %332 = math.tanh %326 : vector<2x128xf32>
    %333 = vector.extract_strided_slice %331 {offsets = [0, 32], sizes = [2, 32], strides = [1, 1]} : vector<2x128xf32> to vector<2x32xf32>
    %334 = arith.mulf %333, %296 : vector<2x32xf32>
    %335 = vector.extract_strided_slice %331 {offsets = [0, 0], sizes = [2, 32], strides = [1, 1]} : vector<2x128xf32> to vector<2x32xf32>
    %336 = vector.extract_strided_slice %332 {offsets = [0, 64], sizes = [2, 32], strides = [1, 1]} : vector<2x128xf32> to vector<2x32xf32>
    %337 = arith.mulf %335, %336 : vector<2x32xf32>
    %338 = arith.addf %334, %337 : vector<2x32xf32>
    %339 = vector.extract_strided_slice %331 {offsets = [0, 96], sizes = [2, 32], strides = [1, 1]} : vector<2x128xf32> to vector<2x32xf32>
    %340 = math.tanh %338 : vector<2x32xf32>
    %341 = arith.mulf %339, %340 : vector<2x32xf32>
    %342 = arith.truncf %341 : vector<2x32xf32> to vector<2x32xbf16>
    %343 = vector.shape_cast %342 : vector<2x32xbf16> to vector<2x1x32xbf16>
    %c0_78 = arith.constant 0 : index
    %c7_79 = arith.constant 7 : index
    %c0_80 = arith.constant 0 : index
    %344 = vector.load %arg8[%c0_78, %c7_79, %c0_80] : memref<2x8x32xbf16, #tpu.memory_space<vmem>>, vector<2x1x32xbf16>
    tpu.vector_store %arg8[%c0_78, %c7_79, %c0_80], %343 {strides = array<i32>} : memref<2x8x32xbf16, #tpu.memory_space<vmem>>, vector<2x1x32xbf16>,
    %c0_81 = arith.constant 0 : index
    %c0_82 = arith.constant 0 : index
    %c0_83 = arith.constant 0 : index
    %345 = vector.load %arg8[%c0_81, %c0_82, %c0_83] : memref<2x8x32xbf16, #tpu.memory_space<vmem>>, vector<2x8x32xbf16>
    %c0_84 = arith.constant 0 : index
    %c0_85 = arith.constant 0 : index
    %c0_86 = arith.constant 0 : index
    %346 = vector.load %arg5[%c0_84, %c0_85, %c0_86] : memref<2x32x16xbf16, #tpu.memory_space<vmem>>, vector<2x32x16xbf16>
    "tpu.trace_start"() <{level = 10 : i32, message = "btd,bdk->btk"}> : () -> ()
    %cst_87 = arith.constant dense<0.000000e+00> : vector<2x8x16xf32>
    %347 = tpu.matmul %345, %346, %cst_87 {dimension_numbers = #tpu.dot_dimension_numbers<[2], [1], [1], [2], [0, 0, 0, 1, 1, 2], [0], [0]>} : vector<2x8x32xbf16>, vector<2x32x16xbf16>, vector<2x8x16xf32> -> vector<2x8x16xf32>
    "tpu.trace_stop"() : () -> ()
    %cst_88 = arith.constant 1.562500e-02 : f32
    %348 = vector.broadcast %cst_88 : f32 to vector<2x8x16xf32>
    %349 = arith.mulf %347, %348 : vector<2x8x16xf32>
    %350 = tpu.iota {dimensions = array<i32: 0>} : vector<8x16xi32>
    %351 = tpu.iota {dimensions = array<i32: 1>} : vector<8x16xi32>
    %c0_89 = arith.constant 0 : index
    %c0_90 = arith.constant 0 : index
    %c0_91 = arith.constant 0 : index
    %352 = vector.load %arg6[%c0_89, %c0_90, %c0_91] : memref<2x8x1xi32, #tpu.memory_space<vmem>>, vector<2x8x1xi32>
    %c0_i32 = arith.constant 0 : i32
    %353 = vector.broadcast %c0_i32 : i32 to vector<2x8x1xi32>
    %354 = arith.cmpi ne, %352, %353 : vector<2x8x1xi32>
    %355 = arith.cmpi sle, %351, %350 : vector<8x16xi32>
    %356 = vector.shape_cast %355 : vector<8x16xi1> to vector<1x8x16xi1>
    %357 = vector.broadcast %354 : vector<2x8x1xi1> to vector<2x8x16xi1>
    %358 = vector.broadcast %356 : vector<1x8x16xi1> to vector<2x8x16xi1>
    %359 = arith.andi %357, %358 : vector<2x8x16xi1>
    %cst_92 = arith.constant -1.000000e+09 : f32
    %360 = vector.broadcast %cst_92 : f32 to vector<2x8x16xf32>
    %361 = arith.select %359, %349, %360 : vector<2x8x16xi1>, vector<2x8x16xf32>
    %cst_93 = arith.constant dense<0xFF800000> : vector<2x8xf32>
    %362 = vector.multi_reduction <maximumf>, %361, %cst_93 [2] : vector<2x8x16xf32> to vector<2x8xf32>
    %363 = vector.shape_cast %362 : vector<2x8xf32> to vector<2x8x1xf32>
    %364 = vector.broadcast %363 : vector<2x8x1xf32> to vector<2x8x16xf32>
    %365 = arith.subf %361, %364 : vector<2x8x16xf32>
    %366 = math.exp %365 : vector<2x8x16xf32>
    %cst_94 = arith.constant dense<0.000000e+00> : vector<2x8xf32>
    %367 = vector.multi_reduction <add>, %366, %cst_94 [2] : vector<2x8x16xf32> to vector<2x8xf32>
    %368 = vector.shape_cast %367 : vector<2x8xf32> to vector<2x8x1xf32>
    %369 = tpu.reciprocal %368 {approx = true} : vector<2x8x1xf32> -> vector<2x8x1xf32>
    %370 = vector.broadcast %369 : vector<2x8x1xf32> to vector<2x8x16xf32>
    %371 = arith.mulf %366, %370 : vector<2x8x16xf32>
    %372 = arith.truncf %371 : vector<2x8x16xf32> to vector<2x8x16xbf16>
    %c0_95 = arith.constant 0 : index
    %c0_96 = arith.constant 0 : index
    %c0_97 = arith.constant 0 : index
    %373 = vector.load %arg4[%c0_95, %c0_96, %c0_97] : memref<2x16x32xbf16, #tpu.memory_space<vmem>>, vector<2x16x32xbf16>
    "tpu.trace_start"() <{level = 10 : i32, message = "btk,bkd->btd"}> : () -> ()
    %cst_98 = arith.constant dense<0.000000e+00> : vector<2x8x32xf32>
    %374 = tpu.matmul %372, %373, %cst_98 {dimension_numbers = #tpu.dot_dimension_numbers<[2], [1], [1], [2], [0, 0, 0, 1, 1, 2], [0], [0]>} : vector<2x8x16xbf16>, vector<2x16x32xbf16>, vector<2x8x32xf32> -> vector<2x8x32xf32>
    "tpu.trace_stop"() : () -> ()
    %c0_99 = arith.constant 0 : index
    %c0_100 = arith.constant 0 : index
    %c0_101 = arith.constant 0 : index
    %375 = vector.load %arg7[%c0_99, %c0_100, %c0_101] : memref<2x8x32xf32, #tpu.memory_space<vmem>>, vector<2x8x32xf32>
    tpu.vector_store %arg7[%c0_99, %c0_100, %c0_101], %374 {strides = array<i32>} : memref<2x8x32xf32, #tpu.memory_space<vmem>>, vector<2x8x32xf32>,
    return
  }
}

</mosaic_0001>

<llo_original>
// kernel: tpu_custom_call.1
$region0: #{tpu_custom_call.1}
  #allocation0 [shape = 'u32[]', space=smem, size = 0x4, offset = 0x4, fixed_abs, tag = 'smem constant byte address 0x4 - core index']
  #allocation1 [shape = 'u32[144,128]{1,0:T(1,128)}', space=vmem, size = 0x12000, scoped, tag = 'internal scratch']
  #allocation2 [shape = 'bf16[2,8,32]{2,1,0:T(8,128)(2,1)}', space=vmem, size = 0x1000, scoped, tag = 'scratch operand']
  %s0 = inlined_call_operand.vmem [shape: f32[8,2,128], index: 0, kind: input, shape index: {}]
  %s1 = inlined_call_operand.vmem [shape: bf16[32,128], index: 1, kind: input, shape index: {}]
  %s2 = inlined_call_operand.vmem [shape: bf16[64,128], index: 2, kind: input, shape index: {}]
  %s3 = inlined_call_operand.vmem [shape: f32[1,128], index: 3, kind: input, shape index: {}]
  %s4 = inlined_call_operand.hbm [shape: bf16[2,16,32], index: 4, kind: input, shape index: {}]
  %s5 = inlined_call_operand.vmem [shape: bf16[2,32,16], index: 5, kind: input, shape index: {}]
  %s6 = inlined_call_operand.vmem [shape: s32[2,8,1], index: 6, kind: input, shape index: {}]
  %s7 = inlined_call_operand.hbm [shape: f32[2,8,32], index: 7, kind: output, shape index: {}]
  %s8 = sld [smem:[#allocation0]]
  $region42: #{tpu_custom_call.1} parent=0
    _
  %s10 = ssub.s32 1, %s8
  %s11 = scalar_select 0, %s10, %s8
  $region1: #{tpu_custom_call.1} parent=0
    #allocation3 [shape = 'u8[8192]{0}', space=vmem, size = 0x2000, scoped, tag = 'input window, operand 4, single buffered']
    #allocation4 [shape = 's32[1]{0}', space=sflag, size = 0x4, scoped, tag = 'scoped memory for tpu_custom_call.1']
    #allocation5 [shape = 's32[1]{0}', space=sflag, size = 0x4, scoped, tag = 'scoped memory for tpu_custom_call.1']
    #allocation6 [shape = 'u8[8192]{0}', space=vmem, size = 0x2000, scoped, tag = 'output window, operand 0, single buffered']
    %12 = vsyncpa [#allocation4], 0
    %13 = vsyncpa [#allocation5], 0
    // Predicated region
    $region2: #{tpu_custom_call.1} parent=1 // pred_check
      _
    $region3: #{tpu_custom_call.1} parent=1 // pred_check_branch
      %15 = sbr.rel (0) target = $region5
    $region4: #{tpu_custom_call.1} parent=1 // pred_region
      _
    $region5: #{tpu_custom_call.1} parent=1 // pred_fallthru
      _
    // Predicated region
    $region6: #{tpu_custom_call.1} parent=1 // pred_check
      _
    $region7: #{tpu_custom_call.1} parent=1 // pred_check_branch
      %17 = sbr.rel (0) target = $region9
    $region8: #{tpu_custom_call.1} parent=1 // pred_region
      _
    $region9: #{tpu_custom_call.1} parent=1 // pred_fallthru
      _
    // Predicated region
    $region10: #{tpu_custom_call.1} parent=1 // pred_check
      _
    $region11: #{tpu_custom_call.1} parent=1 // pred_check_branch
      %19 = sbr.rel (0) target = $region13
    $region12: #{tpu_custom_call.1} parent=1 // pred_region
      _
    $region13: #{tpu_custom_call.1} parent=1 // pred_fallthru
      _
    // Predicated region
    $region14: #{tpu_custom_call.1} parent=1 // pred_check
      _
    $region15: #{tpu_custom_call.1} parent=1 // pred_check_branch
      %21 = sbr.rel (0) target = $region17
    $region16: #{tpu_custom_call.1} parent=1 // pred_region
      _
    $region17: #{tpu_custom_call.1} parent=1 // pred_fallthru
      _
    // Predicated region
    $region18: #{tpu_custom_call.1} parent=1 // pred_check
      _
    $region19: #{tpu_custom_call.1} parent=1 // pred_check_branch
      %23 = sbr.rel (0) target = $region21
    $region20: #{tpu_custom_call.1} parent=1 // pred_region
      %s25 = ssub.s32 256, 256
      %26 = vsyncadd [#allocation4], %s25
      %s27 = sshll.u32 [#allocation3], 4
      %s28 = int_to_ptr.vmem [resolvable:$true] %s27
      %33 = dma.hbm_to_vmem [thread:$0]  %s4, 256, %s28, [#allocation4], 64, 64, 4
    $region21: #{tpu_custom_call.1} parent=1 // pred_fallthru
      _
    // Predicated region
    $region22: #{tpu_custom_call.1} parent=1 // pred_check
      _
    $region23: #{tpu_custom_call.1} parent=1 // pred_check_branch
      %35 = sbr.rel (0) target = $region25
    $region24: #{tpu_custom_call.1} parent=1 // pred_region
      _
    $region25: #{tpu_custom_call.1} parent=1 // pred_fallthru
      _
    // Predicated region
    $region26: #{tpu_custom_call.1} parent=1 // pred_check
      _
    $region27: #{tpu_custom_call.1} parent=1 // pred_check_branch
      %37 = sbr.rel (0) target = $region29
    $region28: #{tpu_custom_call.1} parent=1 // pred_region
      _
    $region29: #{tpu_custom_call.1} parent=1 // pred_fallthru
      _
    // Predicated region
    $region30: #{tpu_custom_call.1} parent=1 // pred_check
      _
    $region31: #{tpu_custom_call.1} parent=1 // pred_check_branch
      %39 = sbr.rel (0) target = $region33
    $region32: #{tpu_custom_call.1} parent=1 // pred_region
      %40 = dma.done [#allocation4], 256
    $region33: #{tpu_custom_call.1} parent=1 // pred_fallthru
      _
    %v42 = vld [vmem:[%s1] sm:$0xf]
    %v43 = vld [vmem:[%s1 + $0x4] sm:$0xf]
    %v44 = vld [vmem:[%s1 + $0x8] sm:$0xf]
    %v45 = vld [vmem:[%s1 + $0xc] sm:$0xf]
    %v46 = vld [vmem:[%s2] sm:$0xf]
    %v47 = vld [vmem:[%s2 + $0x4] sm:$0xf]
    %v48 = vld [vmem:[%s2 + $0x8] sm:$0xf]
    %v49 = vld [vmem:[%s2 + $0xc] sm:$0xf]
    %v50 = vld [vmem:[%s2 + $0x10] sm:$0xf]
    %v51 = vld [vmem:[%s2 + $0x14] sm:$0xf]
    %v52 = vld [vmem:[%s2 + $0x18] sm:$0xf]
    %v53 = vld [vmem:[%s2 + $0x1c] sm:$0xf]
    %v54 = vld [vmem:[%s3] sm:$0x1]
    %v56 = vlaneseq
    %v57 = vshrl.u32 %v56, 7
    %v58 = vsub.s32 0, %v57
    %v59 = vrot.slane %v54, %v58
    %v61 = vld [vmem:[%s0] sm:$0x3]
    %v66 = vunpack.c.l.b16 %v42
    %v67 = vunpack.c.l.b16 %v43
    %v68 = vunpack.c.l.b16 %v44
    %v69 = vunpack.c.l.b16 %v45
    %v70 = vpack.c.b16 %v67, %v66
    %v71 = vpack.c.b16 %v69, %v68
    %vm74 = vcmask 261120
    %v76 = vsel %vm74, 0, 0
    %78 = vmatprep.subr.bf16.mxu0 0
    %79 = vmatpush1.bf16.msra.mxu0 %v70
    %80 = vmatprep.subr.bf16.mxu0 0
    %81 = vmatpush1.bf16.msra.mxu0 %v71
    %82 = vmatprep.subr.bf16.mxu0 0
    %83 = vmatpush1.bf16.msra.mxu0 0
    %84 = vmatprep.subr.bf16.mxu0 0
    %85 = vmatpush1.bf16.msra.mxu0 0
    %86 = vmatprep.subr.bf16.mxu0 0
    %87 = vmatpush1.bf16.msra.mxu0 0
    %88 = vmatprep.subr.bf16.mxu0 0
    %89 = vmatpush1.bf16.msra.mxu0 0
    %90 = vmatprep.subr.bf16.mxu0 0
    %91 = vmatpush1.bf16.msra.mxu0 0
    %92 = vmatprep.subr.bf16.mxu0 0
    %93 = vmatpush1.bf16.msra.mxu0 0
    %94 = vmatprep.subr.bf16.mxu0 0
    %95 = vmatpush1.bf16.msra.mxu0 0
    %96 = vmatprep.subr.bf16.mxu0 0
    %97 = vmatpush1.bf16.msra.mxu0 0
    %98 = vmatprep.subr.bf16.mxu0 0
    %99 = vmatpush1.bf16.msra.mxu0 0
    %100 = vmatprep.subr.bf16.mxu0 0
    %101 = vmatpush1.bf16.msra.mxu0 0
    %102 = vmatprep.subr.bf16.mxu0 0
    %103 = vmatpush1.bf16.msra.mxu0 0
    %104 = vmatprep.subr.bf16.mxu0 0
    %105 = vmatpush1.bf16.msra.mxu0 0
    %106 = vmatprep.subr.bf16.mxu0 0
    %107 = vmatpush1.bf16.msra.mxu0 0
    %108 = vmatprep.subr.bf16.mxu0 0
    %109 = vmatpush1.bf16.msra.mxu0 0
    %110 = vmatprep.mubr.bf16.mxu0 0
    %111 = vmatmul.mubr.bf16.gmra.mrb[0].mxu0 %v76
    %v112 = vpop.f32.mrb[0].mxu0
    %v113 = vadd.f32 0.0, %v112
    %v114 = vpop.f32.mrb[0].mxu0
    %v115 = vpop.f32.mrb[0].mxu0
    %v116 = vpop.f32.mrb[0].mxu0
    %117 = vdwg.mxu0
    %v118 = vadd.f32 %v61, %v113
    %v119 = vxor.u32 %v118, 2147483648
    %v120 = vmul.f32 %v119, 1.442695
    %v121 = vpow.pop %v120
    %v122 = vadd.f32 %v121, 1.0
    %v123 = vrcp.pop %v122
    %v124 = vmul.f32 1.0, %v123
    %v125 = vtanh.pop %v118
    %v126 = vmul.f32 %v124, 0.0
    %128 = vrot.lane.b32.xlu0 %v125, 64
    %v129 = vpop.permute.xlu0 %128
    %v131 = vmul.f32 %v124, %v129
    %133 = vrot.lane.b32.xlu0 %v131, 32
    %v134 = vpop.permute.xlu0 %133
    %v136 = vadd.f32 %v126, %v134
    %v137 = vtanh.pop %v136
    %139 = vrot.lane.b32.xlu0 %v137, 64
    %v140 = vpop.permute.xlu0 %139
    %v142 = vmul.f32 %v124, %v140
    %144 = vrot.lane.b32.xlu0 %v142, 32
    %v145 = vpop.permute.xlu0 %144
    %v147 = vsel %vm74, %v145, 0.0
    %v148 = vpack.c.bf16 %v147, %v147
    %v157 = vunpack.c.l.b16 %v46
    %v158 = vunpack.c.l.b16 %v47
    %v159 = vunpack.c.l.b16 %v48
    %v160 = vunpack.c.l.b16 %v49
    %v161 = vunpack.c.l.b16 %v50
    %v162 = vunpack.c.l.b16 %v51
    %v163 = vunpack.c.l.b16 %v52
    %v164 = vunpack.c.l.b16 %v53
    %v165 = vpack.c.b16 %v158, %v157
    %v166 = vpack.c.b16 %v160, %v159
    %v167 = vpack.c.b16 %v162, %v161
    %v168 = vpack.c.b16 %v164, %v163
    %vm173 = vcmask 523264
    %v175 = vsel %vm173, %v148, 0
    %177 = vmatprep.subr.bf16.mxu0 0
    %178 = vmatpush1.bf16.msra.mxu0 %v165
    %179 = vmatprep.subr.bf16.mxu0 0
    %180 = vmatpush1.bf16.msra.mxu0 %v166
    %181 = vmatprep.subr.bf16.mxu0 0
    %182 = vmatpush1.bf16.msra.mxu0 %v167
    %183 = vmatprep.subr.bf16.mxu0 0
    %184 = vmatpush1.bf16.msra.mxu0 %v168
    %185 = vmatprep.subr.bf16.mxu0 0
    %186 = vmatpush1.bf16.msra.mxu0 0
    %187 = vmatprep.subr.bf16.mxu0 0
    %188 = vmatpush1.bf16.msra.mxu0 0
    %189 = vmatprep.subr.bf16.mxu0 0
    %190 = vmatpush1.bf16.msra.mxu0 0
    %191 = vmatprep.subr.bf16.mxu0 0
    %192 = vmatpush1.bf16.msra.mxu0 0
    %193 = vmatprep.subr.bf16.mxu0 0
    %194 = vmatpush1.bf16.msra.mxu0 0
    %195 = vmatprep.subr.bf16.mxu0 0
    %196 = vmatpush1.bf16.msra.mxu0 0
    %197 = vmatprep.subr.bf16.mxu0 0
    %198 = vmatpush1.bf16.msra.mxu0 0
    %199 = vmatprep.subr.bf16.mxu0 0
    %200 = vmatpush1.bf16.msra.mxu0 0
    %201 = vmatprep.subr.bf16.mxu0 0
    %202 = vmatpush1.bf16.msra.mxu0 0
    %203 = vmatprep.subr.bf16.mxu0 0
    %204 = vmatpush1.bf16.msra.mxu0 0
    %205 = vmatprep.subr.bf16.mxu0 0
    %206 = vmatpush1.bf16.msra.mxu0 0
    %207 = vmatprep.subr.bf16.mxu0 0
    %208 = vmatpush1.bf16.msra.mxu0 0
    %209 = vmatprep.mubr.bf16.mxu0 0
    %210 = vmatmul.mubr.bf16.gmra.mrb[0].mxu0 %v175
    %v211 = vpop.f32.mrb[0].mxu0
    %v212 = vadd.f32 0.0, %v211
    %v213 = vpop.f32.mrb[0].mxu0
    %v214 = vpop.f32.mrb[0].mxu0
    %v215 = vpop.f32.mrb[0].mxu0
    %216 = vdwg.mxu0
    %v217 = vadd.f32 %v59, %v212
    %v218 = vxor.u32 %v217, 2147483648
    %v219 = vmul.f32 %v218, 1.442695
    %v220 = vpow.pop %v219
    %v221 = vadd.f32 %v220, 1.0
    %v222 = vrcp.pop %v221
    %v223 = vmul.f32 1.0, %v222
    %v224 = vtanh.pop %v217
    %v225 = vmul.f32 %v223, 0.0
    %227 = vrot.lane.b32.xlu0 %v224, 64
    %v228 = vpop.permute.xlu0 %227
    %v230 = vmul.f32 %v223, %v228
    %232 = vrot.lane.b32.xlu0 %v230, 32
    %v233 = vpop.permute.xlu0 %232
    %v235 = vadd.f32 %v225, %v233
    %v236 = vtanh.pop %v235
    %238 = vrot.lane.b32.xlu0 %v236, 64
    %v239 = vpop.permute.xlu0 %238
    %v241 = vmul.f32 %v223, %v239
    %v242 = vpack.c.bf16 %v241, %v241
    %v245 = vunpack.c.l.s4 1966171168
    %v246 = vunpack.c.0.s8 %v245
    %v247 = vlaneseq
    %v248 = vshrl.u32 %v247, 7
    %v249 = vsub.s32 %v246, %v248
    %v250 = vrot.slane %v242, %v249
    %v252 = vunpack.c.l.s4 1966171168
    %v253 = vunpack.c.0.s8 %v252
    %v254 = vlaneseq
    %v255 = vshrl.u32 %v254, 7
    %v256 = vsub.s32 %v253, %v255
    %v257 = vrot.slane %v250, %v256
    %v258 = vunpack.i.l.s16 %v257
    %v259 = vunpack.i.h.s16 %v257
    %v260 = vpack.i.b16 %v258, %v258
    %v261 = vpack.i.b16 %v259, %v259
    %v263 = vunpack.c.l.s4 286326784
    %v264 = vunpack.c.0.s8 %v263
    %v265 = vlaneseq
    %v266 = vshrl.u32 %v265, 7
    %v267 = vsub.s32 %v264, %v266
    %v268 = vrot.slane %v260, %v267
    %v270 = vunpack.c.l.s4 286326784
    %v271 = vunpack.c.0.s8 %v270
    %v272 = vlaneseq
    %v273 = vshrl.u32 %v272, 7
    %v274 = vsub.s32 %v271, %v273
    %v275 = vrot.slane %v261, %v274
    %276 = vrot.lane.b32.xlu0 %v268, 32
    %v277 = vpop.permute.xlu0 %276
    %278 = vrot.lane.b32.xlu0 %v275, 32
    %v279 = vpop.permute.xlu0 %278
    %vm282 = vcmask 253952
    %vm283 = vsmask.f32 256
    %vm284 = vmand %vm282, %vm283
    %v285 = vld [vmem:[#allocation2] sm:$0x1]
    %v286 = vsel %vm284, %v277, %v285
    %287 = vst [vmem:[#allocation2] sm:$0x1] %v286
    %v288 = vld [vmem:[#allocation2 + $0x4] sm:$0x1]
    %v289 = vsel %vm284, %v279, %v288
    %290 = vst [vmem:[#allocation2 + $0x4] sm:$0x1] %v289
    %s291 = scalar_lea.vmem %s0, 2
    %v292 = vld [vmem:[%s291] sm:$0x3]
    %v293 = vpack.c.bf16 %v142, %v142
    %295 = vrot.lane.b32.xlu0 %v293, 32
    %v296 = vpop.permute.xlu0 %295
    %v298 = vsel %vm74, %v296, 0
    %300 = vmatprep.subr.bf16.mxu0 0
    %301 = vmatpush1.bf16.msra.mxu0 %v70
    %302 = vmatprep.subr.bf16.mxu0 0
    %303 = vmatpush1.bf16.msra.mxu0 %v71
    %304 = vmatprep.subr.bf16.mxu0 0
    %305 = vmatpush1.bf16.msra.mxu0 0
    %306 = vmatprep.subr.bf16.mxu0 0
    %307 = vmatpush1.bf16.msra.mxu0 0
    %308 = vmatprep.subr.bf16.mxu0 0
    %309 = vmatpush1.bf16.msra.mxu0 0
    %310 = vmatprep.subr.bf16.mxu0 0
    %311 = vmatpush1.bf16.msra.mxu0 0
    %312 = vmatprep.subr.bf16.mxu0 0
    %313 = vmatpush1.bf16.msra.mxu0 0
    %314 = vmatprep.subr.bf16.mxu0 0
    %315 = vmatpush1.bf16.msra.mxu0 0
    %316 = vmatprep.subr.bf16.mxu0 0
    %317 = vmatpush1.bf16.msra.mxu0 0
    %318 = vmatprep.subr.bf16.mxu0 0
    %319 = vmatpush1.bf16.msra.mxu0 0
    %320 = vmatprep.subr.bf16.mxu0 0
    %321 = vmatpush1.bf16.msra.mxu0 0
    %322 = vmatprep.subr.bf16.mxu0 0
    %323 = vmatpush1.bf16.msra.mxu0 0
    %324 = vmatprep.subr.bf16.mxu0 0
    %325 = vmatpush1.bf16.msra.mxu0 0
    %326 = vmatprep.subr.bf16.mxu0 0
    %327 = vmatpush1.bf16.msra.mxu0 0
    %328 = vmatprep.subr.bf16.mxu0 0
    %329 = vmatpush1.bf16.msra.mxu0 0
    %330 = vmatprep.subr.bf16.mxu0 0
    %331 = vmatpush1.bf16.msra.mxu0 0
    %332 = vmatprep.mubr.bf16.mxu0 0
    %333 = vmatmul.mubr.bf16.gmra.mrb[0].mxu0 %v298
    %v334 = vpop.f32.mrb[0].mxu0
    %v335 = vadd.f32 0.0, %v334
    %v336 = vpop.f32.mrb[0].mxu0
    %v337 = vpop.f32.mrb[0].mxu0
    %v338 = vpop.f32.mrb[0].mxu0
    %339 = vdwg.mxu0
    %v340 = vadd.f32 %v292, %v335
    %v341 = vxor.u32 %v340, 2147483648
    %v342 = vmul.f32 %v341, 1.442695
    %v343 = vpow.pop %v342
    %v344 = vadd.f32 %v343, 1.0
    %v345 = vrcp.pop %v344
    %v346 = vmul.f32 1.0, %v345
    %v347 = vtanh.pop %v340
    %v348 = vmul.f32 %v346, %v136
    %350 = vrot.lane.b32.xlu0 %v347, 64
    %v351 = vpop.permute.xlu0 %350
    %v353 = vmul.f32 %v346, %v351
    %355 = vrot.lane.b32.xlu0 %v353, 32
    %v356 = vpop.permute.xlu0 %355
    %v358 = vadd.f32 %v348, %v356
    %v359 = vtanh.pop %v358
    %361 = vrot.lane.b32.xlu0 %v359, 64
    %v362 = vpop.permute.xlu0 %361
    %v364 = vmul.f32 %v346, %v362
    %366 = vrot.lane.b32.xlu0 %v364, 32
    %v367 = vpop.permute.xlu0 %366
    %370 = vrot.lane.b32.xlu0 %v241, 64
    %v371 = vpop.permute.xlu0 %370
    %v373 = vsel %vm74, %v367, %v371
    %v374 = vpack.c.bf16 %v373, %v373
    %v376 = vsel %vm173, %v374, 0
    %378 = vmatprep.subr.bf16.mxu0 0
    %379 = vmatpush1.bf16.msra.mxu0 %v165
    %380 = vmatprep.subr.bf16.mxu0 0
    %381 = vmatpush1.bf16.msra.mxu0 %v166
    %382 = vmatprep.subr.bf16.mxu0 0
    %383 = vmatpush1.bf16.msra.mxu0 %v167
    %384 = vmatprep.subr.bf16.mxu0 0
    %385 = vmatpush1.bf16.msra.mxu0 %v168
    %386 = vmatprep.subr.bf16.mxu0 0
    %387 = vmatpush1.bf16.msra.mxu0 0
    %388 = vmatprep.subr.bf16.mxu0 0
    %389 = vmatpush1.bf16.msra.mxu0 0
    %390 = vmatprep.subr.bf16.mxu0 0
    %391 = vmatpush1.bf16.msra.mxu0 0
    %392 = vmatprep.subr.bf16.mxu0 0
    %393 = vmatpush1.bf16.msra.mxu0 0
    %394 = vmatprep.subr.bf16.mxu0 0
    %395 = vmatpush1.bf16.msra.mxu0 0
    %396 = vmatprep.subr.bf16.mxu0 0
    %397 = vmatpush1.bf16.msra.mxu0 0
    %398 = vmatprep.subr.bf16.mxu0 0
    %399 = vmatpush1.bf16.msra.mxu0 0
    %400 = vmatprep.subr.bf16.mxu0 0
    %401 = vmatpush1.bf16.msra.mxu0 0
    %402 = vmatprep.subr.bf16.mxu0 0
    %403 = vmatpush1.bf16.msra.mxu0 0
    %404 = vmatprep.subr.bf16.mxu0 0
    %405 = vmatpush1.bf16.msra.mxu0 0
    %406 = vmatprep.subr.bf16.mxu0 0
    %407 = vmatpush1.bf16.msra.mxu0 0
    %408 = vmatprep.subr.bf16.mxu0 0
    %409 = vmatpush1.bf16.msra.mxu0 0
    %410 = vmatprep.mubr.bf16.mxu0 0
    %411 = vmatmul.mubr.bf16.gmra.mrb[0].mxu0 %v376
    %v412 = vpop.f32.mrb[0].mxu0
    %v413 = vadd.f32 0.0, %v412
    %v414 = vpop.f32.mrb[0].mxu0
    %v415 = vpop.f32.mrb[0].mxu0
    %v416 = vpop.f32.mrb[0].mxu0
    %417 = vdwg.mxu0
    %v418 = vadd.f32 %v59, %v413
    %v419 = vxor.u32 %v418, 2147483648
    %v420 = vmul.f32 %v419, 1.442695
    %v421 = vpow.pop %v420
    %v422 = vadd.f32 %v421, 1.0
    %v423 = vrcp.pop %v422
    %v424 = vmul.f32 1.0, %v423
    %v425 = vtanh.pop %v418
    %v426 = vmul.f32 %v424, %v235
    %428 = vrot.lane.b32.xlu0 %v425, 64
    %v429 = vpop.permute.xlu0 %428
    %v431 = vmul.f32 %v424, %v429
    %433 = vrot.lane.b32.xlu0 %v431, 32
    %v434 = vpop.permute.xlu0 %433
    %v436 = vadd.f32 %v426, %v434
    %v437 = vtanh.pop %v436
    %439 = vrot.lane.b32.xlu0 %v437, 64
    %v440 = vpop.permute.xlu0 %439
    %v442 = vmul.f32 %v424, %v440
    %v443 = vpack.c.bf16 %v442, %v442
    %v446 = vunpack.c.l.s4 1966171168
    %v447 = vunpack.c.0.s8 %v446
    %v448 = vlaneseq
    %v449 = vshrl.u32 %v448, 7
    %v450 = vsub.s32 %v447, %v449
    %v451 = vrot.slane %v443, %v450
    %v453 = vunpack.c.l.s4 1966171168
    %v454 = vunpack.c.0.s8 %v453
    %v455 = vlaneseq
    %v456 = vshrl.u32 %v455, 7
    %v457 = vsub.s32 %v454, %v456
    %v458 = vrot.slane %v451, %v457
    %v459 = vunpack.i.l.s16 %v458
    %v460 = vunpack.i.h.s16 %v458
    %v461 = vpack.i.b16 %v459, %v459
    %v462 = vpack.i.b16 %v460, %v460
    %v464 = vunpack.c.l.s4 286326784
    %v465 = vunpack.c.0.s8 %v464
    %v466 = vlaneseq
    %v467 = vshrl.u32 %v466, 7
    %v468 = vsub.s32 %v465, %v467
    %v469 = vrot.slane %v461, %v468
    %v471 = vunpack.c.l.s4 286326784
    %v472 = vunpack.c.0.s8 %v471
    %v473 = vlaneseq
    %v474 = vshrl.u32 %v473, 7
    %v475 = vsub.s32 %v472, %v474
    %v476 = vrot.slane %v462, %v475
    %477 = vrot.lane.b32.xlu0 %v469, 32
    %v478 = vpop.permute.xlu0 %477
    %479 = vrot.lane.b32.xlu0 %v476, 32
    %v480 = vpop.permute.xlu0 %479
    %vm483 = vsmask.f32 7938
    %vm484 = vmand %vm282, %vm483
    %v485 = vld [vmem:[#allocation2] sm:$0x1]
    %v486 = vsel %vm484, %v478, %v485
    %487 = vst [vmem:[#allocation2] sm:$0x1] %v486
    %v488 = vld [vmem:[#allocation2 + $0x4] sm:$0x1]
    %v489 = vsel %vm484, %v480, %v488
    %490 = vst [vmem:[#allocation2 + $0x4] sm:$0x1] %v489
    %s491 = scalar_lea.vmem %s0, 4
    %v492 = vld [vmem:[%s491] sm:$0x3]
    %v493 = vpack.c.bf16 %v364, %v364
    %495 = vrot.lane.b32.xlu0 %v493, 32
    %v496 = vpop.permute.xlu0 %495
    %v498 = vsel %vm74, %v496, 0
    %500 = vmatprep.subr.bf16.mxu0 0
    %501 = vmatpush1.bf16.msra.mxu0 %v70
    %502 = vmatprep.subr.bf16.mxu0 0
    %503 = vmatpush1.bf16.msra.mxu0 %v71
    %504 = vmatprep.subr.bf16.mxu0 0
    %505 = vmatpush1.bf16.msra.mxu0 0
    %506 = vmatprep.subr.bf16.mxu0 0
    %507 = vmatpush1.bf16.msra.mxu0 0
    %508 = vmatprep.subr.bf16.mxu0 0
    %509 = vmatpush1.bf16.msra.mxu0 0
    %510 = vmatprep.subr.bf16.mxu0 0
    %511 = vmatpush1.bf16.msra.mxu0 0
    %512 = vmatprep.subr.bf16.mxu0 0
    %513 = vmatpush1.bf16.msra.mxu0 0
    %514 = vmatprep.subr.bf16.mxu0 0
    %515 = vmatpush1.bf16.msra.mxu0 0
    %516 = vmatprep.subr.bf16.mxu0 0
    %517 = vmatpush1.bf16.msra.mxu0 0
    %518 = vmatprep.subr.bf16.mxu0 0
    %519 = vmatpush1.bf16.msra.mxu0 0
    %520 = vmatprep.subr.bf16.mxu0 0
    %521 = vmatpush1.bf16.msra.mxu0 0
    %522 = vmatprep.subr.bf16.mxu0 0
    %523 = vmatpush1.bf16.msra.mxu0 0
    %524 = vmatprep.subr.bf16.mxu0 0
    %525 = vmatpush1.bf16.msra.mxu0 0
    %526 = vmatprep.subr.bf16.mxu0 0
    %527 = vmatpush1.bf16.msra.mxu0 0
    %528 = vmatprep.subr.bf16.mxu0 0
    %529 = vmatpush1.bf16.msra.mxu0 0
    %530 = vmatprep.subr.bf16.mxu0 0
    %531 = vmatpush1.bf16.msra.mxu0 0
    %532 = vmatprep.mubr.bf16.mxu0 0
    %533 = vmatmul.mubr.bf16.gmra.mrb[0].mxu0 %v498
    %v534 = vpop.f32.mrb[0].mxu0
    %v535 = vadd.f32 0.0, %v534
    %v536 = vpop.f32.mrb[0].mxu0
    %v537 = vpop.f32.mrb[0].mxu0
    %v538 = vpop.f32.mrb[0].mxu0
    %539 = vdwg.mxu0
    %v540 = vadd.f32 %v492, %v535
    %v541 = vxor.u32 %v540, 2147483648
    %v542 = vmul.f32 %v541, 1.442695
    %v543 = vpow.pop %v542
    %v544 = vadd.f32 %v543, 1.0
    %v545 = vrcp.pop %v544
    %v546 = vmul.f32 1.0, %v545
    %v547 = vtanh.pop %v540
    %v548 = vmul.f32 %v546, %v358
    %550 = vrot.lane.b32.xlu0 %v547, 64
    %v551 = vpop.permute.xlu0 %550
    %v553 = vmul.f32 %v546, %v551
    %555 = vrot.lane.b32.xlu0 %v553, 32
    %v556 = vpop.permute.xlu0 %555
    %v558 = vadd.f32 %v548, %v556
    %v559 = vtanh.pop %v558
    %561 = vrot.lane.b32.xlu0 %v559, 64
    %v562 = vpop.permute.xlu0 %561
    %v564 = vmul.f32 %v546, %v562
    %566 = vrot.lane.b32.xlu0 %v564, 32
    %v567 = vpop.permute.xlu0 %566
    %570 = vrot.lane.b32.xlu0 %v442, 64
    %v571 = vpop.permute.xlu0 %570
    %v573 = vsel %vm74, %v567, %v571
    %v574 = vpack.c.bf16 %v573, %v573
    %v576 = vsel %vm173, %v574, 0
    %578 = vmatprep.subr.bf16.mxu0 0
    %579 = vmatpush1.bf16.msra.mxu0 %v165
    %580 = vmatprep.subr.bf16.mxu0 0
    %581 = vmatpush1.bf16.msra.mxu0 %v166
    %582 = vmatprep.subr.bf16.mxu0 0
    %583 = vmatpush1.bf16.msra.mxu0 %v167
    %584 = vmatprep.subr.bf16.mxu0 0
    %585 = vmatpush1.bf16.msra.mxu0 %v168
    %586 = vmatprep.subr.bf16.mxu0 0
    %587 = vmatpush1.bf16.msra.mxu0 0
    %588 = vmatprep.subr.bf16.mxu0 0
    %589 = vmatpush1.bf16.msra.mxu0 0
    %590 = vmatprep.subr.bf16.mxu0 0
    %591 = vmatpush1.bf16.msra.mxu0 0
    %592 = vmatprep.subr.bf16.mxu0 0
    %593 = vmatpush1.bf16.msra.mxu0 0
    %594 = vmatprep.subr.bf16.mxu0 0
    %595 = vmatpush1.bf16.msra.mxu0 0
    %596 = vmatprep.subr.bf16.mxu0 0
    %597 = vmatpush1.bf16.msra.mxu0 0
    %598 = vmatprep.subr.bf16.mxu0 0
    %599 = vmatpush1.bf16.msra.mxu0 0
    %600 = vmatprep.subr.bf16.mxu0 0
    %601 = vmatpush1.bf16.msra.mxu0 0
    %602 = vmatprep.subr.bf16.mxu0 0
    %603 = vmatpush1.bf16.msra.mxu0 0
    %604 = vmatprep.subr.bf16.mxu0 0
    %605 = vmatpush1.bf16.msra.mxu0 0
    %606 = vmatprep.subr.bf16.mxu0 0
    %607 = vmatpush1.bf16.msra.mxu0 0
    %608 = vmatprep.subr.bf16.mxu0 0
    %609 = vmatpush1.bf16.msra.mxu0 0
    %610 = vmatprep.mubr.bf16.mxu0 0
    %611 = vmatmul.mubr.bf16.gmra.mrb[0].mxu0 %v576
    %v612 = vpop.f32.mrb[0].mxu0
    %v613 = vadd.f32 0.0, %v612
    %v614 = vpop.f32.mrb[0].mxu0
    %v615 = vpop.f32.mrb[0].mxu0
    %v616 = vpop.f32.mrb[0].mxu0
    %617 = vdwg.mxu0
    %v618 = vadd.f32 %v59, %v613
    %v619 = vxor.u32 %v618, 2147483648
    %v620 = vmul.f32 %v619, 1.442695
    %v621 = vpow.pop %v620
    %v622 = vadd.f32 %v621, 1.0
    %v623 = vrcp.pop %v622
    %v624 = vmul.f32 1.0, %v623
    %v625 = vtanh.pop %v618
    %v626 = vmul.f32 %v624, %v436
    %628 = vrot.lane.b32.xlu0 %v625, 64
    %v629 = vpop.permute.xlu0 %628
    %v631 = vmul.f32 %v624, %v629
    %633 = vrot.lane.b32.xlu0 %v631, 32
    %v634 = vpop.permute.xlu0 %633
    %v636 = vadd.f32 %v626, %v634
    %v637 = vtanh.pop %v636
    %639 = vrot.lane.b32.xlu0 %v637, 64
    %v640 = vpop.permute.xlu0 %639
    %v642 = vmul.f32 %v624, %v640
    %v643 = vpack.c.bf16 %v642, %v642
    %v646 = vunpack.c.l.s4 1966171168
    %v647 = vunpack.c.0.s8 %v646
    %v648 = vlaneseq
    %v649 = vshrl.u32 %v648, 7
    %v650 = vsub.s32 %v647, %v649
    %v651 = vrot.slane %v643, %v650
    %v653 = vunpack.c.l.s4 1966171168
    %v654 = vunpack.c.0.s8 %v653
    %v655 = vlaneseq
    %v656 = vshrl.u32 %v655, 7
    %v657 = vsub.s32 %v654, %v656
    %v658 = vrot.slane %v651, %v657
    %v659 = vunpack.i.l.s16 %v658
    %v660 = vunpack.i.h.s16 %v658
    %v661 = vpack.i.b16 %v659, %v659
    %v662 = vpack.i.b16 %v660, %v660
    %v664 = vunpack.c.l.s4 286326784
    %v665 = vunpack.c.0.s8 %v664
    %v666 = vlaneseq
    %v667 = vshrl.u32 %v666, 7
    %v668 = vsub.s32 %v665, %v667
    %v669 = vrot.slane %v661, %v668
    %v671 = vunpack.c.l.s4 286326784
    %v672 = vunpack.c.0.s8 %v671
    %v673 = vlaneseq
    %v674 = vshrl.u32 %v673, 7
    %v675 = vsub.s32 %v672, %v674
    %v676 = vrot.slane %v662, %v675
    %677 = vrot.lane.b32.xlu0 %v669, 32
    %v678 = vpop.permute.xlu0 %677
    %679 = vrot.lane.b32.xlu0 %v676, 32
    %v680 = vpop.permute.xlu0 %679
    %vm683 = vcmask 254977
    %vm684 = vsmask.f32 1280
    %vm685 = vmand %vm683, %vm684
    %v686 = vld [vmem:[#allocation2] sm:$0x2]
    %v687 = vsel %vm685, %v678, %v686
    %688 = vst [vmem:[#allocation2] sm:$0x2] %v687
    %v689 = vld [vmem:[#allocation2 + $0x4] sm:$0x2]
    %v690 = vsel %vm685, %v680, %v689
    %691 = vst [vmem:[#allocation2 + $0x4] sm:$0x2] %v690
    %s692 = scalar_lea.vmem %s0, 6
    %v693 = vld [vmem:[%s692] sm:$0x3]
    %v694 = vpack.c.bf16 %v564, %v564
    %696 = vrot.lane.b32.xlu0 %v694, 32
    %v697 = vpop.permute.xlu0 %696
    %v699 = vsel %vm74, %v697, 0
    %701 = vmatprep.subr.bf16.mxu0 0
    %702 = vmatpush1.bf16.msra.mxu0 %v70
    %703 = vmatprep.subr.bf16.mxu0 0
    %704 = vmatpush1.bf16.msra.mxu0 %v71
    %705 = vmatprep.subr.bf16.mxu0 0
    %706 = vmatpush1.bf16.msra.mxu0 0
    %707 = vmatprep.subr.bf16.mxu0 0
    %708 = vmatpush1.bf16.msra.mxu0 0
    %709 = vmatprep.subr.bf16.mxu0 0
    %710 = vmatpush1.bf16.msra.mxu0 0
    %711 = vmatprep.subr.bf16.mxu0 0
    %712 = vmatpush1.bf16.msra.mxu0 0
    %713 = vmatprep.subr.bf16.mxu0 0
    %714 = vmatpush1.bf16.msra.mxu0 0
    %715 = vmatprep.subr.bf16.mxu0 0
    %716 = vmatpush1.bf16.msra.mxu0 0
    %717 = vmatprep.subr.bf16.mxu0 0
    %718 = vmatpush1.bf16.msra.mxu0 0
    %719 = vmatprep.subr.bf16.mxu0 0
    %720 = vmatpush1.bf16.msra.mxu0 0
    %721 = vmatprep.subr.bf16.mxu0 0
    %722 = vmatpush1.bf16.msra.mxu0 0
    %723 = vmatprep.subr.bf16.mxu0 0
    %724 = vmatpush1.bf16.msra.mxu0 0
    %725 = vmatprep.subr.bf16.mxu0 0
    %726 = vmatpush1.bf16.msra.mxu0 0
    %727 = vmatprep.subr.bf16.mxu0 0
    %728 = vmatpush1.bf16.msra.mxu0 0
    %729 = vmatprep.subr.bf16.mxu0 0
    %730 = vmatpush1.bf16.msra.mxu0 0
    %731 = vmatprep.subr.bf16.mxu0 0
    %732 = vmatpush1.bf16.msra.mxu0 0
    %733 = vmatprep.mubr.bf16.mxu0 0
    %734 = vmatmul.mubr.bf16.gmra.mrb[0].mxu0 %v699
    %v735 = vpop.f32.mrb[0].mxu0
    %v736 = vadd.f32 0.0, %v735
    %v737 = vpop.f32.mrb[0].mxu0
    %v738 = vpop.f32.mrb[0].mxu0
    %v739 = vpop.f32.mrb[0].mxu0
    %740 = vdwg.mxu0
    %v741 = vadd.f32 %v693, %v736
    %v742 = vxor.u32 %v741, 2147483648
    %v743 = vmul.f32 %v742, 1.442695
    %v744 = vpow.pop %v743
    %v745 = vadd.f32 %v744, 1.0
    %v746 = vrcp.pop %v745
    %v747 = vmul.f32 1.0, %v746
    %v748 = vtanh.pop %v741
    %v749 = vmul.f32 %v747, %v558
    %751 = vrot.lane.b32.xlu0 %v748, 64
    %v752 = vpop.permute.xlu0 %751
    %v754 = vmul.f32 %v747, %v752
    %756 = vrot.lane.b32.xlu0 %v754, 32
    %v757 = vpop.permute.xlu0 %756
    %v759 = vadd.f32 %v749, %v757
    %v760 = vtanh.pop %v759
    %762 = vrot.lane.b32.xlu0 %v760, 64
    %v763 = vpop.permute.xlu0 %762
    %v765 = vmul.f32 %v747, %v763
    %767 = vrot.lane.b32.xlu0 %v765, 32
    %v768 = vpop.permute.xlu0 %767
    %771 = vrot.lane.b32.xlu0 %v642, 64
    %v772 = vpop.permute.xlu0 %771
    %v774 = vsel %vm74, %v768, %v772
    %v775 = vpack.c.bf16 %v774, %v774
    %v777 = vsel %vm173, %v775, 0
    %779 = vmatprep.subr.bf16.mxu0 0
    %780 = vmatpush1.bf16.msra.mxu0 %v165
    %781 = vmatprep.subr.bf16.mxu0 0
    %782 = vmatpush1.bf16.msra.mxu0 %v166
    %783 = vmatprep.subr.bf16.mxu0 0
    %784 = vmatpush1.bf16.msra.mxu0 %v167
    %785 = vmatprep.subr.bf16.mxu0 0
    %786 = vmatpush1.bf16.msra.mxu0 %v168
    %787 = vmatprep.subr.bf16.mxu0 0
    %788 = vmatpush1.bf16.msra.mxu0 0
    %789 = vmatprep.subr.bf16.mxu0 0
    %790 = vmatpush1.bf16.msra.mxu0 0
    %791 = vmatprep.subr.bf16.mxu0 0
    %792 = vmatpush1.bf16.msra.mxu0 0
    %793 = vmatprep.subr.bf16.mxu0 0
    %794 = vmatpush1.bf16.msra.mxu0 0
    %795 = vmatprep.subr.bf16.mxu0 0
    %796 = vmatpush1.bf16.msra.mxu0 0
    %797 = vmatprep.subr.bf16.mxu0 0
    %798 = vmatpush1.bf16.msra.mxu0 0
    %799 = vmatprep.subr.bf16.mxu0 0
    %800 = vmatpush1.bf16.msra.mxu0 0
    %801 = vmatprep.subr.bf16.mxu0 0
    %802 = vmatpush1.bf16.msra.mxu0 0
    %803 = vmatprep.subr.bf16.mxu0 0
    %804 = vmatpush1.bf16.msra.mxu0 0
    %805 = vmatprep.subr.bf16.mxu0 0
    %806 = vmatpush1.bf16.msra.mxu0 0
    %807 = vmatprep.subr.bf16.mxu0 0
    %808 = vmatpush1.bf16.msra.mxu0 0
    %809 = vmatprep.subr.bf16.mxu0 0
    %810 = vmatpush1.bf16.msra.mxu0 0
    %811 = vmatprep.mubr.bf16.mxu0 0
    %812 = vmatmul.mubr.bf16.gmra.mrb[0].mxu0 %v777
    %v813 = vpop.f32.mrb[0].mxu0
    %v814 = vadd.f32 0.0, %v813
    %v815 = vpop.f32.mrb[0].mxu0
    %v816 = vpop.f32.mrb[0].mxu0
    %v817 = vpop.f32.mrb[0].mxu0
    %818 = vdwg.mxu0
    %v819 = vadd.f32 %v59, %v814
    %v820 = vxor.u32 %v819, 2147483648
    %v821 = vmul.f32 %v820, 1.442695
    %v822 = vpow.pop %v821
    %v823 = vadd.f32 %v822, 1.0
    %v824 = vrcp.pop %v823
    %v825 = vmul.f32 1.0, %v824
    %v826 = vtanh.pop %v819
    %v827 = vmul.f32 %v825, %v636
    %829 = vrot.lane.b32.xlu0 %v826, 64
    %v830 = vpop.permute.xlu0 %829
    %v832 = vmul.f32 %v825, %v830
    %834 = vrot.lane.b32.xlu0 %v832, 32
    %v835 = vpop.permute.xlu0 %834
    %v837 = vadd.f32 %v827, %v835
    %v838 = vtanh.pop %v837
    %840 = vrot.lane.b32.xlu0 %v838, 64
    %v841 = vpop.permute.xlu0 %840
    %v843 = vmul.f32 %v825, %v841
    %v844 = vpack.c.bf16 %v843, %v843
    %v847 = vunpack.c.l.s4 1966171168
    %v848 = vunpack.c.0.s8 %v847
    %v849 = vlaneseq
    %v850 = vshrl.u32 %v849, 7
    %v851 = vsub.s32 %v848, %v850
    %v852 = vrot.slane %v844, %v851
    %v854 = vunpack.c.l.s4 1966171168
    %v855 = vunpack.c.0.s8 %v854
    %v856 = vlaneseq
    %v857 = vshrl.u32 %v856, 7
    %v858 = vsub.s32 %v855, %v857
    %v859 = vrot.slane %v852, %v858
    %v860 = vunpack.i.l.s16 %v859
    %v861 = vunpack.i.h.s16 %v859
    %v862 = vpack.i.b16 %v860, %v860
    %v863 = vpack.i.b16 %v861, %v861
    %v865 = vunpack.c.l.s4 286326784
    %v866 = vunpack.c.0.s8 %v865
    %v867 = vlaneseq
    %v868 = vshrl.u32 %v867, 7
    %v869 = vsub.s32 %v866, %v868
    %v870 = vrot.slane %v862, %v869
    %v872 = vunpack.c.l.s4 286326784
    %v873 = vunpack.c.0.s8 %v872
    %v874 = vlaneseq
    %v875 = vshrl.u32 %v874, 7
    %v876 = vsub.s32 %v873, %v875
    %v877 = vrot.slane %v863, %v876
    %878 = vrot.lane.b32.xlu0 %v870, 32
    %v879 = vpop.permute.xlu0 %878
    %880 = vrot.lane.b32.xlu0 %v877, 32
    %v881 = vpop.permute.xlu0 %880
    %vm884 = vsmask.f32 7942
    %vm885 = vmand %vm683, %vm884
    %v886 = vld [vmem:[#allocation2] sm:$0x2]
    %v887 = vsel %vm885, %v879, %v886
    %888 = vst [vmem:[#allocation2] sm:$0x2] %v887
    %v889 = vld [vmem:[#allocation2 + $0x4] sm:$0x2]
    %v890 = vsel %vm885, %v881, %v889
    %891 = vst [vmem:[#allocation2 + $0x4] sm:$0x2] %v890
    %s892 = scalar_lea.vmem %s0, 8
    %v893 = vld [vmem:[%s892] sm:$0x3]
    %v894 = vpack.c.bf16 %v765, %v765
    %896 = vrot.lane.b32.xlu0 %v894, 32
    %v897 = vpop.permute.xlu0 %896
    %v899 = vsel %vm74, %v897, 0
    %901 = vmatprep.subr.bf16.mxu0 0
    %902 = vmatpush1.bf16.msra.mxu0 %v70
    %903 = vmatprep.subr.bf16.mxu0 0
    %904 = vmatpush1.bf16.msra.mxu0 %v71
    %905 = vmatprep.subr.bf16.mxu0 0
    %906 = vmatpush1.bf16.msra.mxu0 0
    %907 = vmatprep.subr.bf16.mxu0 0
    %908 = vmatpush1.bf16.msra.mxu0 0
    %909 = vmatprep.subr.bf16.mxu0 0
    %910 = vmatpush1.bf16.msra.mxu0 0
    %911 = vmatprep.subr.bf16.mxu0 0
    %912 = vmatpush1.bf16.msra.mxu0 0
    %913 = vmatprep.subr.bf16.mxu0 0
    %914 = vmatpush1.bf16.msra.mxu0 0
    %915 = vmatprep.subr.bf16.mxu0 0
    %916 = vmatpush1.bf16.msra.mxu0 0
    %917 = vmatprep.subr.bf16.mxu0 0
    %918 = vmatpush1.bf16.msra.mxu0 0
    %919 = vmatprep.subr.bf16.mxu0 0
    %920 = vmatpush1.bf16.msra.mxu0 0
    %921 = vmatprep.subr.bf16.mxu0 0
    %922 = vmatpush1.bf16.msra.mxu0 0
    %923 = vmatprep.subr.bf16.mxu0 0
    %924 = vmatpush1.bf16.msra.mxu0 0
    %925 = vmatprep.subr.bf16.mxu0 0
    %926 = vmatpush1.bf16.msra.mxu0 0
    %927 = vmatprep.subr.bf16.mxu0 0
    %928 = vmatpush1.bf16.msra.mxu0 0
    %929 = vmatprep.subr.bf16.mxu0 0
    %930 = vmatpush1.bf16.msra.mxu0 0
    %931 = vmatprep.subr.bf16.mxu0 0
    %932 = vmatpush1.bf16.msra.mxu0 0
    %933 = vmatprep.mubr.bf16.mxu0 0
    %934 = vmatmul.mubr.bf16.gmra.mrb[0].mxu0 %v899
    %v935 = vpop.f32.mrb[0].mxu0
    %v936 = vadd.f32 0.0, %v935
    %v937 = vpop.f32.mrb[0].mxu0
    %v938 = vpop.f32.mrb[0].mxu0
    %v939 = vpop.f32.mrb[0].mxu0
    %940 = vdwg.mxu0
    %v941 = vadd.f32 %v893, %v936
    %v942 = vxor.u32 %v941, 2147483648
    %v943 = vmul.f32 %v942, 1.442695
    %v944 = vpow.pop %v943
    %v945 = vadd.f32 %v944, 1.0
    %v946 = vrcp.pop %v945
    %v947 = vmul.f32 1.0, %v946
    %v948 = vtanh.pop %v941
    %v949 = vmul.f32 %v947, %v759
    %951 = vrot.lane.b32.xlu0 %v948, 64
    %v952 = vpop.permute.xlu0 %951
    %v954 = vmul.f32 %v947, %v952
    %956 = vrot.lane.b32.xlu0 %v954, 32
    %v957 = vpop.permute.xlu0 %956
    %v959 = vadd.f32 %v949, %v957
    %v960 = vtanh.pop %v959
    %962 = vrot.lane.b32.xlu0 %v960, 64
    %v963 = vpop.permute.xlu0 %962
    %v965 = vmul.f32 %v947, %v963
    %967 = vrot.lane.b32.xlu0 %v965, 32
    %v968 = vpop.permute.xlu0 %967
    %971 = vrot.lane.b32.xlu0 %v843, 64
    %v972 = vpop.permute.xlu0 %971
    %v974 = vsel %vm74, %v968, %v972
    %v975 = vpack.c.bf16 %v974, %v974
    %v977 = vsel %vm173, %v975, 0
    %979 = vmatprep.subr.bf16.mxu0 0
    %980 = vmatpush1.bf16.msra.mxu0 %v165
    %981 = vmatprep.subr.bf16.mxu0 0
    %982 = vmatpush1.bf16.msra.mxu0 %v166
    %983 = vmatprep.subr.bf16.mxu0 0
    %984 = vmatpush1.bf16.msra.mxu0 %v167
    %985 = vmatprep.subr.bf16.mxu0 0
    %986 = vmatpush1.bf16.msra.mxu0 %v168
    %987 = vmatprep.subr.bf16.mxu0 0
    %988 = vmatpush1.bf16.msra.mxu0 0
    %989 = vmatprep.subr.bf16.mxu0 0
    %990 = vmatpush1.bf16.msra.mxu0 0
    %991 = vmatprep.subr.bf16.mxu0 0
    %992 = vmatpush1.bf16.msra.mxu0 0
    %993 = vmatprep.subr.bf16.mxu0 0
    %994 = vmatpush1.bf16.msra.mxu0 0
    %995 = vmatprep.subr.bf16.mxu0 0
    %996 = vmatpush1.bf16.msra.mxu0 0
    %997 = vmatprep.subr.bf16.mxu0 0
    %998 = vmatpush1.bf16.msra.mxu0 0
    %999 = vmatprep.subr.bf16.mxu0 0
    %1000 = vmatpush1.bf16.msra.mxu0 0
    %1001 = vmatprep.subr.bf16.mxu0 0
    %1002 = vmatpush1.bf16.msra.mxu0 0
    %1003 = vmatprep.subr.bf16.mxu0 0
    %1004 = vmatpush1.bf16.msra.mxu0 0
    %1005 = vmatprep.subr.bf16.mxu0 0
    %1006 = vmatpush1.bf16.msra.mxu0 0
    %1007 = vmatprep.subr.bf16.mxu0 0
    %1008 = vmatpush1.bf16.msra.mxu0 0
    %1009 = vmatprep.subr.bf16.mxu0 0
    %1010 = vmatpush1.bf16.msra.mxu0 0
    %1011 = vmatprep.mubr.bf16.mxu0 0
    %1012 = vmatmul.mubr.bf16.gmra.mrb[0].mxu0 %v977
    %v1013 = vpop.f32.mrb[0].mxu0
    %v1014 = vadd.f32 0.0, %v1013
    %v1015 = vpop.f32.mrb[0].mxu0
    %v1016 = vpop.f32.mrb[0].mxu0
    %v1017 = vpop.f32.mrb[0].mxu0
    %1018 = vdwg.mxu0
    %v1019 = vadd.f32 %v59, %v1014
    %v1020 = vxor.u32 %v1019, 2147483648
    %v1021 = vmul.f32 %v1020, 1.442695
    %v1022 = vpow.pop %v1021
    %v1023 = vadd.f32 %v1022, 1.0
    %v1024 = vrcp.pop %v1023
    %v1025 = vmul.f32 1.0, %v1024
    %v1026 = vtanh.pop %v1019
    %v1027 = vmul.f32 %v1025, %v837
    %1029 = vrot.lane.b32.xlu0 %v1026, 64
    %v1030 = vpop.permute.xlu0 %1029
    %v1032 = vmul.f32 %v1025, %v1030
    %1034 = vrot.lane.b32.xlu0 %v1032, 32
    %v1035 = vpop.permute.xlu0 %1034
    %v1037 = vadd.f32 %v1027, %v1035
    %v1038 = vtanh.pop %v1037
    %1040 = vrot.lane.b32.xlu0 %v1038, 64
    %v1041 = vpop.permute.xlu0 %1040
    %v1043 = vmul.f32 %v1025, %v1041
    %v1044 = vpack.c.bf16 %v1043, %v1043
    %v1047 = vunpack.c.l.s4 1966171168
    %v1048 = vunpack.c.0.s8 %v1047
    %v1049 = vlaneseq
    %v1050 = vshrl.u32 %v1049, 7
    %v1051 = vsub.s32 %v1048, %v1050
    %v1052 = vrot.slane %v1044, %v1051
    %v1054 = vunpack.c.l.s4 1966171168
    %v1055 = vunpack.c.0.s8 %v1054
    %v1056 = vlaneseq
    %v1057 = vshrl.u32 %v1056, 7
    %v1058 = vsub.s32 %v1055, %v1057
    %v1059 = vrot.slane %v1052, %v1058
    %v1060 = vunpack.i.l.s16 %v1059
    %v1061 = vunpack.i.h.s16 %v1059
    %v1062 = vpack.i.b16 %v1060, %v1060
    %v1063 = vpack.i.b16 %v1061, %v1061
    %v1065 = vunpack.c.l.s4 286326784
    %v1066 = vunpack.c.0.s8 %v1065
    %v1067 = vlaneseq
    %v1068 = vshrl.u32 %v1067, 7
    %v1069 = vsub.s32 %v1066, %v1068
    %v1070 = vrot.slane %v1062, %v1069
    %v1072 = vunpack.c.l.s4 286326784
    %v1073 = vunpack.c.0.s8 %v1072
    %v1074 = vlaneseq
    %v1075 = vshrl.u32 %v1074, 7
    %v1076 = vsub.s32 %v1073, %v1075
    %v1077 = vrot.slane %v1063, %v1076
    %1078 = vrot.lane.b32.xlu0 %v1070, 32
    %v1079 = vpop.permute.xlu0 %1078
    %1080 = vrot.lane.b32.xlu0 %v1077, 32
    %v1081 = vpop.permute.xlu0 %1080
    %vm1084 = vcmask 256002
    %vm1085 = vsmask.f32 2304
    %vm1086 = vmand %vm1084, %vm1085
    %v1087 = vld [vmem:[#allocation2] sm:$0x4]
    %v1088 = vsel %vm1086, %v1079, %v1087
    %1089 = vst [vmem:[#allocation2] sm:$0x4] %v1088
    %v1090 = vld [vmem:[#allocation2 + $0x4] sm:$0x4]
    %v1091 = vsel %vm1086, %v1081, %v1090
    %1092 = vst [vmem:[#allocation2 + $0x4] sm:$0x4] %v1091
    %s1093 = scalar_lea.vmem %s0, 10
    %v1094 = vld [vmem:[%s1093] sm:$0x3]
    %v1095 = vpack.c.bf16 %v965, %v965
    %1097 = vrot.lane.b32.xlu0 %v1095, 32
    %v1098 = vpop.permute.xlu0 %1097
    %v1100 = vsel %vm74, %v1098, 0
    %1102 = vmatprep.subr.bf16.mxu0 0
    %1103 = vmatpush1.bf16.msra.mxu0 %v70
    %1104 = vmatprep.subr.bf16.mxu0 0
    %1105 = vmatpush1.bf16.msra.mxu0 %v71
    %1106 = vmatprep.subr.bf16.mxu0 0
    %1107 = vmatpush1.bf16.msra.mxu0 0
    %1108 = vmatprep.subr.bf16.mxu0 0
    %1109 = vmatpush1.bf16.msra.mxu0 0
    %1110 = vmatprep.subr.bf16.mxu0 0
    %1111 = vmatpush1.bf16.msra.mxu0 0
    %1112 = vmatprep.subr.bf16.mxu0 0
    %1113 = vmatpush1.bf16.msra.mxu0 0
    %1114 = vmatprep.subr.bf16.mxu0 0
    %1115 = vmatpush1.bf16.msra.mxu0 0
    %1116 = vmatprep.subr.bf16.mxu0 0
    %1117 = vmatpush1.bf16.msra.mxu0 0
    %1118 = vmatprep.subr.bf16.mxu0 0
    %1119 = vmatpush1.bf16.msra.mxu0 0
    %1120 = vmatprep.subr.bf16.mxu0 0
    %1121 = vmatpush1.bf16.msra.mxu0 0
    %1122 = vmatprep.subr.bf16.mxu0 0
    %1123 = vmatpush1.bf16.msra.mxu0 0
    %1124 = vmatprep.subr.bf16.mxu0 0
    %1125 = vmatpush1.bf16.msra.mxu0 0
    %1126 = vmatprep.subr.bf16.mxu0 0
    %1127 = vmatpush1.bf16.msra.mxu0 0
    %1128 = vmatprep.subr.bf16.mxu0 0
    %1129 = vmatpush1.bf16.msra.mxu0 0
    %1130 = vmatprep.subr.bf16.mxu0 0
    %1131 = vmatpush1.bf16.msra.mxu0 0
    %1132 = vmatprep.subr.bf16.mxu0 0
    %1133 = vmatpush1.bf16.msra.mxu0 0
    %1134 = vmatprep.mubr.bf16.mxu0 0
    %1135 = vmatmul.mubr.bf16.gmra.mrb[0].mxu0 %v1100
    %v1136 = vpop.f32.mrb[0].mxu0
    %v1137 = vadd.f32 0.0, %v1136
    %v1138 = vpop.f32.mrb[0].mxu0
    %v1139 = vpop.f32.mrb[0].mxu0
    %v1140 = vpop.f32.mrb[0].mxu0
    %1141 = vdwg.mxu0
    %v1142 = vadd.f32 %v1094, %v1137
    %v1143 = vxor.u32 %v1142, 2147483648
    %v1144 = vmul.f32 %v1143, 1.442695
    %v1145 = vpow.pop %v1144
    %v1146 = vadd.f32 %v1145, 1.0
    %v1147 = vrcp.pop %v1146
    %v1148 = vmul.f32 1.0, %v1147
    %v1149 = vtanh.pop %v1142
    %v1150 = vmul.f32 %v1148, %v959
    %1152 = vrot.lane.b32.xlu0 %v1149, 64
    %v1153 = vpop.permute.xlu0 %1152
    %v1155 = vmul.f32 %v1148, %v1153
    %1157 = vrot.lane.b32.xlu0 %v1155, 32
    %v1158 = vpop.permute.xlu0 %1157
    %v1160 = vadd.f32 %v1150, %v1158
    %v1161 = vtanh.pop %v1160
    %1163 = vrot.lane.b32.xlu0 %v1161, 64
    %v1164 = vpop.permute.xlu0 %1163
    %v1166 = vmul.f32 %v1148, %v1164
    %1168 = vrot.lane.b32.xlu0 %v1166, 32
    %v1169 = vpop.permute.xlu0 %1168
    %1172 = vrot.lane.b32.xlu0 %v1043, 64
    %v1173 = vpop.permute.xlu0 %1172
    %v1175 = vsel %vm74, %v1169, %v1173
    %v1176 = vpack.c.bf16 %v1175, %v1175
    %v1178 = vsel %vm173, %v1176, 0
    %1180 = vmatprep.subr.bf16.mxu0 0
    %1181 = vmatpush1.bf16.msra.mxu0 %v165
    %1182 = vmatprep.subr.bf16.mxu0 0
    %1183 = vmatpush1.bf16.msra.mxu0 %v166
    %1184 = vmatprep.subr.bf16.mxu0 0
    %1185 = vmatpush1.bf16.msra.mxu0 %v167
    %1186 = vmatprep.subr.bf16.mxu0 0
    %1187 = vmatpush1.bf16.msra.mxu0 %v168
    %1188 = vmatprep.subr.bf16.mxu0 0
    %1189 = vmatpush1.bf16.msra.mxu0 0
    %1190 = vmatprep.subr.bf16.mxu0 0
    %1191 = vmatpush1.bf16.msra.mxu0 0
    %1192 = vmatprep.subr.bf16.mxu0 0
    %1193 = vmatpush1.bf16.msra.mxu0 0
    %1194 = vmatprep.subr.bf16.mxu0 0
    %1195 = vmatpush1.bf16.msra.mxu0 0
    %1196 = vmatprep.subr.bf16.mxu0 0
    %1197 = vmatpush1.bf16.msra.mxu0 0
    %1198 = vmatprep.subr.bf16.mxu0 0
    %1199 = vmatpush1.bf16.msra.mxu0 0
    %1200 = vmatprep.subr.bf16.mxu0 0
    %1201 = vmatpush1.bf16.msra.mxu0 0
    %1202 = vmatprep.subr.bf16.mxu0 0
    %1203 = vmatpush1.bf16.msra.mxu0 0
    %1204 = vmatprep.subr.bf16.mxu0 0
    %1205 = vmatpush1.bf16.msra.mxu0 0
    %1206 = vmatprep.subr.bf16.mxu0 0
    %1207 = vmatpush1.bf16.msra.mxu0 0
    %1208 = vmatprep.subr.bf16.mxu0 0
    %1209 = vmatpush1.bf16.msra.mxu0 0
    %1210 = vmatprep.subr.bf16.mxu0 0
    %1211 = vmatpush1.bf16.msra.mxu0 0
    %1212 = vmatprep.mubr.bf16.mxu0 0
    %1213 = vmatmul.mubr.bf16.gmra.mrb[0].mxu0 %v1178
    %v1214 = vpop.f32.mrb[0].mxu0
    %v1215 = vadd.f32 0.0, %v1214
    %v1216 = vpop.f32.mrb[0].mxu0
    %v1217 = vpop.f32.mrb[0].mxu0
    %v1218 = vpop.f32.mrb[0].mxu0
    %1219 = vdwg.mxu0
    %v1220 = vadd.f32 %v59, %v1215
    %v1221 = vxor.u32 %v1220, 2147483648
    %v1222 = vmul.f32 %v1221, 1.442695
    %v1223 = vpow.pop %v1222
    %v1224 = vadd.f32 %v1223, 1.0
    %v1225 = vrcp.pop %v1224
    %v1226 = vmul.f32 1.0, %v1225
    %v1227 = vtanh.pop %v1220
    %v1228 = vmul.f32 %v1226, %v1037
    %1230 = vrot.lane.b32.xlu0 %v1227, 64
    %v1231 = vpop.permute.xlu0 %1230
    %v1233 = vmul.f32 %v1226, %v1231
    %1235 = vrot.lane.b32.xlu0 %v1233, 32
    %v1236 = vpop.permute.xlu0 %1235
    %v1238 = vadd.f32 %v1228, %v1236
    %v1239 = vtanh.pop %v1238
    %1241 = vrot.lane.b32.xlu0 %v1239, 64
    %v1242 = vpop.permute.xlu0 %1241
    %v1244 = vmul.f32 %v1226, %v1242
    %v1245 = vpack.c.bf16 %v1244, %v1244
    %v1248 = vunpack.c.l.s4 1966171168
    %v1249 = vunpack.c.0.s8 %v1248
    %v1250 = vlaneseq
    %v1251 = vshrl.u32 %v1250, 7
    %v1252 = vsub.s32 %v1249, %v1251
    %v1253 = vrot.slane %v1245, %v1252
    %v1255 = vunpack.c.l.s4 1966171168
    %v1256 = vunpack.c.0.s8 %v1255
    %v1257 = vlaneseq
    %v1258 = vshrl.u32 %v1257, 7
    %v1259 = vsub.s32 %v1256, %v1258
    %v1260 = vrot.slane %v1253, %v1259
    %v1261 = vunpack.i.l.s16 %v1260
    %v1262 = vunpack.i.h.s16 %v1260
    %v1263 = vpack.i.b16 %v1261, %v1261
    %v1264 = vpack.i.b16 %v1262, %v1262
    %v1266 = vunpack.c.l.s4 286326784
    %v1267 = vunpack.c.0.s8 %v1266
    %v1268 = vlaneseq
    %v1269 = vshrl.u32 %v1268, 7
    %v1270 = vsub.s32 %v1267, %v1269
    %v1271 = vrot.slane %v1263, %v1270
    %v1273 = vunpack.c.l.s4 286326784
    %v1274 = vunpack.c.0.s8 %v1273
    %v1275 = vlaneseq
    %v1276 = vshrl.u32 %v1275, 7
    %v1277 = vsub.s32 %v1274, %v1276
    %v1278 = vrot.slane %v1264, %v1277
    %1279 = vrot.lane.b32.xlu0 %v1271, 32
    %v1280 = vpop.permute.xlu0 %1279
    %1281 = vrot.lane.b32.xlu0 %v1278, 32
    %v1282 = vpop.permute.xlu0 %1281
    %vm1285 = vsmask.f32 7946
    %vm1286 = vmand %vm1084, %vm1285
    %v1287 = vld [vmem:[#allocation2] sm:$0x4]
    %v1288 = vsel %vm1286, %v1280, %v1287
    %1289 = vst [vmem:[#allocation2] sm:$0x4] %v1288
    %v1290 = vld [vmem:[#allocation2 + $0x4] sm:$0x4]
    %v1291 = vsel %vm1286, %v1282, %v1290
    %1292 = vst [vmem:[#allocation2 + $0x4] sm:$0x4] %v1291
    %s1293 = scalar_lea.vmem %s0, 12
    %v1294 = vld [vmem:[%s1293] sm:$0x3]
    %v1295 = vpack.c.bf16 %v1166, %v1166
    %1297 = vrot.lane.b32.xlu0 %v1295, 32
    %v1298 = vpop.permute.xlu0 %1297
    %v1300 = vsel %vm74, %v1298, 0
    %1302 = vmatprep.subr.bf16.mxu0 0
    %1303 = vmatpush1.bf16.msra.mxu0 %v70
    %1304 = vmatprep.subr.bf16.mxu0 0
    %1305 = vmatpush1.bf16.msra.mxu0 %v71
    %1306 = vmatprep.subr.bf16.mxu0 0
    %1307 = vmatpush1.bf16.msra.mxu0 0
    %1308 = vmatprep.subr.bf16.mxu0 0
    %1309 = vmatpush1.bf16.msra.mxu0 0
    %1310 = vmatprep.subr.bf16.mxu0 0
    %1311 = vmatpush1.bf16.msra.mxu0 0
    %1312 = vmatprep.subr.bf16.mxu0 0
    %1313 = vmatpush1.bf16.msra.mxu0 0
    %1314 = vmatprep.subr.bf16.mxu0 0
    %1315 = vmatpush1.bf16.msra.mxu0 0
    %1316 = vmatprep.subr.bf16.mxu0 0
    %1317 = vmatpush1.bf16.msra.mxu0 0
    %1318 = vmatprep.subr.bf16.mxu0 0
    %1319 = vmatpush1.bf16.msra.mxu0 0
    %1320 = vmatprep.subr.bf16.mxu0 0
    %1321 = vmatpush1.bf16.msra.mxu0 0
    %1322 = vmatprep.subr.bf16.mxu0 0
    %1323 = vmatpush1.bf16.msra.mxu0 0
    %1324 = vmatprep.subr.bf16.mxu0 0
    %1325 = vmatpush1.bf16.msra.mxu0 0
    %1326 = vmatprep.subr.bf16.mxu0 0
    %1327 = vmatpush1.bf16.msra.mxu0 0
    %1328 = vmatprep.subr.bf16.mxu0 0
    %1329 = vmatpush1.bf16.msra.mxu0 0
    %1330 = vmatprep.subr.bf16.mxu0 0
    %1331 = vmatpush1.bf16.msra.mxu0 0
    %1332 = vmatprep.subr.bf16.mxu0 0
    %1333 = vmatpush1.bf16.msra.mxu0 0
    %1334 = vmatprep.mubr.bf16.mxu0 0
    %1335 = vmatmul.mubr.bf16.gmra.mrb[0].mxu0 %v1300
    %v1336 = vpop.f32.mrb[0].mxu0
    %v1337 = vadd.f32 0.0, %v1336
    %v1338 = vpop.f32.mrb[0].mxu0
    %v1339 = vpop.f32.mrb[0].mxu0
    %v1340 = vpop.f32.mrb[0].mxu0
    %1341 = vdwg.mxu0
    %v1342 = vadd.f32 %v1294, %v1337
    %v1343 = vxor.u32 %v1342, 2147483648
    %v1344 = vmul.f32 %v1343, 1.442695
    %v1345 = vpow.pop %v1344
    %v1346 = vadd.f32 %v1345, 1.0
    %v1347 = vrcp.pop %v1346
    %v1348 = vmul.f32 1.0, %v1347
    %v1349 = vtanh.pop %v1342
    %v1350 = vmul.f32 %v1348, %v1160
    %1352 = vrot.lane.b32.xlu0 %v1349, 64
    %v1353 = vpop.permute.xlu0 %1352
    %v1355 = vmul.f32 %v1348, %v1353
    %1357 = vrot.lane.b32.xlu0 %v1355, 32
    %v1358 = vpop.permute.xlu0 %1357
    %v1360 = vadd.f32 %v1350, %v1358
    %v1361 = vtanh.pop %v1360
    %1363 = vrot.lane.b32.xlu0 %v1361, 64
    %v1364 = vpop.permute.xlu0 %1363
    %v1366 = vmul.f32 %v1348, %v1364
    %1368 = vrot.lane.b32.xlu0 %v1366, 32
    %v1369 = vpop.permute.xlu0 %1368
    %1372 = vrot.lane.b32.xlu0 %v1244, 64
    %v1373 = vpop.permute.xlu0 %1372
    %v1375 = vsel %vm74, %v1369, %v1373
    %v1376 = vpack.c.bf16 %v1375, %v1375
    %v1378 = vsel %vm173, %v1376, 0
    %1380 = vmatprep.subr.bf16.mxu0 0
    %1381 = vmatpush1.bf16.msra.mxu0 %v165
    %1382 = vmatprep.subr.bf16.mxu0 0
    %1383 = vmatpush1.bf16.msra.mxu0 %v166
    %1384 = vmatprep.subr.bf16.mxu0 0
    %1385 = vmatpush1.bf16.msra.mxu0 %v167
    %1386 = vmatprep.subr.bf16.mxu0 0
    %1387 = vmatpush1.bf16.msra.mxu0 %v168
    %1388 = vmatprep.subr.bf16.mxu0 0
    %1389 = vmatpush1.bf16.msra.mxu0 0
    %1390 = vmatprep.subr.bf16.mxu0 0
    %1391 = vmatpush1.bf16.msra.mxu0 0
    %1392 = vmatprep.subr.bf16.mxu0 0
    %1393 = vmatpush1.bf16.msra.mxu0 0
    %1394 = vmatprep.subr.bf16.mxu0 0
    %1395 = vmatpush1.bf16.msra.mxu0 0
    %1396 = vmatprep.subr.bf16.mxu0 0
    %1397 = vmatpush1.bf16.msra.mxu0 0
    %1398 = vmatprep.subr.bf16.mxu0 0
    %1399 = vmatpush1.bf16.msra.mxu0 0
    %1400 = vmatprep.subr.bf16.mxu0 0
    %1401 = vmatpush1.bf16.msra.mxu0 0
    %1402 = vmatprep.subr.bf16.mxu0 0
    %1403 = vmatpush1.bf16.msra.mxu0 0
    %1404 = vmatprep.subr.bf16.mxu0 0
    %1405 = vmatpush1.bf16.msra.mxu0 0
    %1406 = vmatprep.subr.bf16.mxu0 0
    %1407 = vmatpush1.bf16.msra.mxu0 0
    %1408 = vmatprep.subr.bf16.mxu0 0
    %1409 = vmatpush1.bf16.msra.mxu0 0
    %1410 = vmatprep.subr.bf16.mxu0 0
    %1411 = vmatpush1.bf16.msra.mxu0 0
    %1412 = vmatprep.mubr.bf16.mxu0 0
    %1413 = vmatmul.mubr.bf16.gmra.mrb[0].mxu0 %v1378
    %v1414 = vpop.f32.mrb[0].mxu0
    %v1415 = vadd.f32 0.0, %v1414
    %v1416 = vpop.f32.mrb[0].mxu0
    %v1417 = vpop.f32.mrb[0].mxu0
    %v1418 = vpop.f32.mrb[0].mxu0
    %1419 = vdwg.mxu0
    %v1420 = vadd.f32 %v59, %v1415
    %v1421 = vxor.u32 %v1420, 2147483648
    %v1422 = vmul.f32 %v1421, 1.442695
    %v1423 = vpow.pop %v1422
    %v1424 = vadd.f32 %v1423, 1.0
    %v1425 = vrcp.pop %v1424
    %v1426 = vmul.f32 1.0, %v1425
    %v1427 = vtanh.pop %v1420
    %v1428 = vmul.f32 %v1426, %v1238
    %1430 = vrot.lane.b32.xlu0 %v1427, 64
    %v1431 = vpop.permute.xlu0 %1430
    %v1433 = vmul.f32 %v1426, %v1431
    %1435 = vrot.lane.b32.xlu0 %v1433, 32
    %v1436 = vpop.permute.xlu0 %1435
    %v1438 = vadd.f32 %v1428, %v1436
    %v1439 = vtanh.pop %v1438
    %1441 = vrot.lane.b32.xlu0 %v1439, 64
    %v1442 = vpop.permute.xlu0 %1441
    %v1444 = vmul.f32 %v1426, %v1442
    %v1445 = vpack.c.bf16 %v1444, %v1444
    %v1448 = vunpack.c.l.s4 1966171168
    %v1449 = vunpack.c.0.s8 %v1448
    %v1450 = vlaneseq
    %v1451 = vshrl.u32 %v1450, 7
    %v1452 = vsub.s32 %v1449, %v1451
    %v1453 = vrot.slane %v1445, %v1452
    %v1455 = vunpack.c.l.s4 1966171168
    %v1456 = vunpack.c.0.s8 %v1455
    %v1457 = vlaneseq
    %v1458 = vshrl.u32 %v1457, 7
    %v1459 = vsub.s32 %v1456, %v1458
    %v1460 = vrot.slane %v1453, %v1459
    %v1461 = vunpack.i.l.s16 %v1460
    %v1462 = vunpack.i.h.s16 %v1460
    %v1463 = vpack.i.b16 %v1461, %v1461
    %v1464 = vpack.i.b16 %v1462, %v1462
    %v1466 = vunpack.c.l.s4 286326784
    %v1467 = vunpack.c.0.s8 %v1466
    %v1468 = vlaneseq
    %v1469 = vshrl.u32 %v1468, 7
    %v1470 = vsub.s32 %v1467, %v1469
    %v1471 = vrot.slane %v1463, %v1470
    %v1473 = vunpack.c.l.s4 286326784
    %v1474 = vunpack.c.0.s8 %v1473
    %v1475 = vlaneseq
    %v1476 = vshrl.u32 %v1475, 7
    %v1477 = vsub.s32 %v1474, %v1476
    %v1478 = vrot.slane %v1464, %v1477
    %1479 = vrot.lane.b32.xlu0 %v1471, 32
    %v1480 = vpop.permute.xlu0 %1479
    %1481 = vrot.lane.b32.xlu0 %v1478, 32
    %v1482 = vpop.permute.xlu0 %1481
    %vm1485 = vcmask 257027
    %vm1486 = vsmask.f32 3328
    %vm1487 = vmand %vm1485, %vm1486
    %v1488 = vld [vmem:[#allocation2] sm:$0x8]
    %v1489 = vsel %vm1487, %v1480, %v1488
    %1490 = vst [vmem:[#allocation2] sm:$0x8] %v1489
    %v1491 = vld [vmem:[#allocation2 + $0x4] sm:$0x8]
    %v1492 = vsel %vm1487, %v1482, %v1491
    %1493 = vst [vmem:[#allocation2 + $0x4] sm:$0x8] %v1492
    %s1494 = scalar_lea.vmem %s0, 14
    %v1495 = vld [vmem:[%s1494] sm:$0x3]
    %v1496 = vpack.c.bf16 %v1366, %v1366
    %1498 = vrot.lane.b32.xlu0 %v1496, 32
    %v1499 = vpop.permute.xlu0 %1498
    %v1501 = vsel %vm74, %v1499, 0
    %1503 = vmatprep.subr.bf16.mxu0 0
    %1504 = vmatpush1.bf16.msra.mxu0 %v70
    %1505 = vmatprep.subr.bf16.mxu0 0
    %1506 = vmatpush1.bf16.msra.mxu0 %v71
    %1507 = vmatprep.subr.bf16.mxu0 0
    %1508 = vmatpush1.bf16.msra.mxu0 0
    %1509 = vmatprep.subr.bf16.mxu0 0
    %1510 = vmatpush1.bf16.msra.mxu0 0
    %1511 = vmatprep.subr.bf16.mxu0 0
    %1512 = vmatpush1.bf16.msra.mxu0 0
    %1513 = vmatprep.subr.bf16.mxu0 0
    %1514 = vmatpush1.bf16.msra.mxu0 0
    %1515 = vmatprep.subr.bf16.mxu0 0
    %1516 = vmatpush1.bf16.msra.mxu0 0
    %1517 = vmatprep.subr.bf16.mxu0 0
    %1518 = vmatpush1.bf16.msra.mxu0 0
    %1519 = vmatprep.subr.bf16.mxu0 0
    %1520 = vmatpush1.bf16.msra.mxu0 0
    %1521 = vmatprep.subr.bf16.mxu0 0
    %1522 = vmatpush1.bf16.msra.mxu0 0
    %1523 = vmatprep.subr.bf16.mxu0 0
    %1524 = vmatpush1.bf16.msra.mxu0 0
    %1525 = vmatprep.subr.bf16.mxu0 0
    %1526 = vmatpush1.bf16.msra.mxu0 0
    %1527 = vmatprep.subr.bf16.mxu0 0
    %1528 = vmatpush1.bf16.msra.mxu0 0
    %1529 = vmatprep.subr.bf16.mxu0 0
    %1530 = vmatpush1.bf16.msra.mxu0 0
    %1531 = vmatprep.subr.bf16.mxu0 0
    %1532 = vmatpush1.bf16.msra.mxu0 0
    %1533 = vmatprep.subr.bf16.mxu0 0
    %1534 = vmatpush1.bf16.msra.mxu0 0
    %1535 = vmatprep.mubr.bf16.mxu0 0
    %1536 = vmatmul.mubr.bf16.gmra.mrb[0].mxu0 %v1501
    %v1537 = vpop.f32.mrb[0].mxu0
    %v1538 = vadd.f32 0.0, %v1537
    %v1539 = vpop.f32.mrb[0].mxu0
    %v1540 = vpop.f32.mrb[0].mxu0
    %v1541 = vpop.f32.mrb[0].mxu0
    %1542 = vdwg.mxu0
    %v1543 = vadd.f32 %v1495, %v1538
    %v1544 = vxor.u32 %v1543, 2147483648
    %v1545 = vmul.f32 %v1544, 1.442695
    %v1546 = vpow.pop %v1545
    %v1547 = vadd.f32 %v1546, 1.0
    %v1548 = vrcp.pop %v1547
    %v1549 = vmul.f32 1.0, %v1548
    %v1550 = vtanh.pop %v1543
    %v1551 = vmul.f32 %v1549, %v1360
    %1553 = vrot.lane.b32.xlu0 %v1550, 64
    %v1554 = vpop.permute.xlu0 %1553
    %v1556 = vmul.f32 %v1549, %v1554
    %1558 = vrot.lane.b32.xlu0 %v1556, 32
    %v1559 = vpop.permute.xlu0 %1558
    %v1561 = vadd.f32 %v1551, %v1559
    %v1562 = vtanh.pop %v1561
    %1564 = vrot.lane.b32.xlu0 %v1562, 64
    %v1565 = vpop.permute.xlu0 %1564
    %v1567 = vmul.f32 %v1549, %v1565
    %1569 = vrot.lane.b32.xlu0 %v1567, 32
    %v1570 = vpop.permute.xlu0 %1569
    %1573 = vrot.lane.b32.xlu0 %v1444, 64
    %v1574 = vpop.permute.xlu0 %1573
    %v1576 = vsel %vm74, %v1570, %v1574
    %v1577 = vpack.c.bf16 %v1576, %v1576
    %v1579 = vsel %vm173, %v1577, 0
    %1581 = vmatprep.subr.bf16.mxu0 0
    %1582 = vmatpush1.bf16.msra.mxu0 %v165
    %1583 = vmatprep.subr.bf16.mxu0 0
    %1584 = vmatpush1.bf16.msra.mxu0 %v166
    %1585 = vmatprep.subr.bf16.mxu0 0
    %1586 = vmatpush1.bf16.msra.mxu0 %v167
    %1587 = vmatprep.subr.bf16.mxu0 0
    %1588 = vmatpush1.bf16.msra.mxu0 %v168
    %1589 = vmatprep.subr.bf16.mxu0 0
    %1590 = vmatpush1.bf16.msra.mxu0 0
    %1591 = vmatprep.subr.bf16.mxu0 0
    %1592 = vmatpush1.bf16.msra.mxu0 0
    %1593 = vmatprep.subr.bf16.mxu0 0
    %1594 = vmatpush1.bf16.msra.mxu0 0
    %1595 = vmatprep.subr.bf16.mxu0 0
    %1596 = vmatpush1.bf16.msra.mxu0 0
    %1597 = vmatprep.subr.bf16.mxu0 0
    %1598 = vmatpush1.bf16.msra.mxu0 0
    %1599 = vmatprep.subr.bf16.mxu0 0
    %1600 = vmatpush1.bf16.msra.mxu0 0
    %1601 = vmatprep.subr.bf16.mxu0 0
    %1602 = vmatpush1.bf16.msra.mxu0 0
    %1603 = vmatprep.subr.bf16.mxu0 0
    %1604 = vmatpush1.bf16.msra.mxu0 0
    %1605 = vmatprep.subr.bf16.mxu0 0
    %1606 = vmatpush1.bf16.msra.mxu0 0
    %1607 = vmatprep.subr.bf16.mxu0 0
    %1608 = vmatpush1.bf16.msra.mxu0 0
    %1609 = vmatprep.subr.bf16.mxu0 0
    %1610 = vmatpush1.bf16.msra.mxu0 0
    %1611 = vmatprep.subr.bf16.mxu0 0
    %1612 = vmatpush1.bf16.msra.mxu0 0
    %1613 = vmatprep.mubr.bf16.mxu0 0
    %1614 = vmatmul.mubr.bf16.gmra.mrb[0].mxu0 %v1579
    %v1615 = vpop.f32.mrb[0].mxu0
    %v1616 = vadd.f32 0.0, %v1615
    %v1617 = vpop.f32.mrb[0].mxu0
    %v1618 = vpop.f32.mrb[0].mxu0
    %v1619 = vpop.f32.mrb[0].mxu0
    %1620 = vdwg.mxu0
    %v1621 = vadd.f32 %v59, %v1616
    %v1622 = vxor.u32 %v1621, 2147483648
    %v1623 = vmul.f32 %v1622, 1.442695
    %v1624 = vpow.pop %v1623
    %v1625 = vadd.f32 %v1624, 1.0
    %v1626 = vrcp.pop %v1625
    %v1627 = vmul.f32 1.0, %v1626
    %v1628 = vtanh.pop %v1621
    %v1629 = vmul.f32 %v1627, %v1438
    %1631 = vrot.lane.b32.xlu0 %v1628, 64
    %v1632 = vpop.permute.xlu0 %1631
    %v1634 = vmul.f32 %v1627, %v1632
    %1636 = vrot.lane.b32.xlu0 %v1634, 32
    %v1637 = vpop.permute.xlu0 %1636
    %v1639 = vadd.f32 %v1629, %v1637
    %v1640 = vtanh.pop %v1639
    %1642 = vrot.lane.b32.xlu0 %v1640, 64
    %v1643 = vpop.permute.xlu0 %1642
    %v1645 = vmul.f32 %v1627, %v1643
    %v1646 = vpack.c.bf16 %v1645, %v1645
    %v1649 = vunpack.c.l.s4 1966171168
    %v1650 = vunpack.c.0.s8 %v1649
    %v1651 = vlaneseq
    %v1652 = vshrl.u32 %v1651, 7
    %v1653 = vsub.s32 %v1650, %v1652
    %v1654 = vrot.slane %v1646, %v1653
    %v1656 = vunpack.c.l.s4 1966171168
    %v1657 = vunpack.c.0.s8 %v1656
    %v1658 = vlaneseq
    %v1659 = vshrl.u32 %v1658, 7
    %v1660 = vsub.s32 %v1657, %v1659
    %v1661 = vrot.slane %v1654, %v1660
    %v1662 = vunpack.i.l.s16 %v1661
    %v1663 = vunpack.i.h.s16 %v1661
    %v1664 = vpack.i.b16 %v1662, %v1662
    %v1665 = vpack.i.b16 %v1663, %v1663
    %v1667 = vunpack.c.l.s4 286326784
    %v1668 = vunpack.c.0.s8 %v1667
    %v1669 = vlaneseq
    %v1670 = vshrl.u32 %v1669, 7
    %v1671 = vsub.s32 %v1668, %v1670
    %v1672 = vrot.slane %v1664, %v1671
    %v1674 = vunpack.c.l.s4 286326784
    %v1675 = vunpack.c.0.s8 %v1674
    %v1676 = vlaneseq
    %v1677 = vshrl.u32 %v1676, 7
    %v1678 = vsub.s32 %v1675, %v1677
    %v1679 = vrot.slane %v1665, %v1678
    %1680 = vrot.lane.b32.xlu0 %v1672, 32
    %v1681 = vpop.permute.xlu0 %1680
    %1682 = vrot.lane.b32.xlu0 %v1679, 32
    %v1683 = vpop.permute.xlu0 %1682
    %vm1686 = vsmask.f32 7950
    %vm1687 = vmand %vm1485, %vm1686
    %v1688 = vld [vmem:[#allocation2] sm:$0x8]
    %v1689 = vsel %vm1687, %v1681, %v1688
    %1690 = vst [vmem:[#allocation2] sm:$0x8] %v1689
    %v1691 = vld [vmem:[#allocation2 + $0x4] sm:$0x8]
    %v1692 = vsel %vm1687, %v1683, %v1691
    %1693 = vst [vmem:[#allocation2 + $0x4] sm:$0x8] %v1692
    %v1694 = vld [vmem:[#allocation2] sm:$0xf]
    %v1695 = vld [vmem:[#allocation2 + $0x4] sm:$0xf]
    %v1696 = vld [vmem:[%s5] sm:$0xf]
    %v1697 = vld [vmem:[%s5 + $0x4] sm:$0xf]
    %v1698 = vld [vmem:[%s5 + $0x8] sm:$0xf]
    %v1699 = vld [vmem:[%s5 + $0xc] sm:$0xf]
    %v1700 = vld [vmem:[%s5 + $0x10] sm:$0xf]
    %v1701 = vld [vmem:[%s5 + $0x14] sm:$0xf]
    %v1702 = vld [vmem:[%s5 + $0x18] sm:$0xf]
    %v1703 = vld [vmem:[%s5 + $0x1c] sm:$0xf]
    %v1708 = vunpack.c.l.b16 %v1696
    %v1709 = vunpack.c.l.b16 %v1697
    %v1710 = vunpack.c.l.b16 %v1698
    %v1711 = vunpack.c.l.b16 %v1699
    %v1712 = vpack.c.b16 %v1709, %v1708
    %v1713 = vpack.c.b16 %v1711, %v1710
    %v1717 = vsel %vm74, %v1694, 0
    %1719 = vmatprep.subr.bf16.mxu0 0
    %1720 = vmatpush1.bf16.msra.mxu0 %v1712
    %1721 = vmatprep.subr.bf16.mxu0 0
    %1722 = vmatpush1.bf16.msra.mxu0 %v1713
    %1723 = vmatprep.subr.bf16.mxu0 0
    %1724 = vmatpush1.bf16.msra.mxu0 0
    %1725 = vmatprep.subr.bf16.mxu0 0
    %1726 = vmatpush1.bf16.msra.mxu0 0
    %1727 = vmatprep.subr.bf16.mxu0 0
    %1728 = vmatpush1.bf16.msra.mxu0 0
    %1729 = vmatprep.subr.bf16.mxu0 0
    %1730 = vmatpush1.bf16.msra.mxu0 0
    %1731 = vmatprep.subr.bf16.mxu0 0
    %1732 = vmatpush1.bf16.msra.mxu0 0
    %1733 = vmatprep.subr.bf16.mxu0 0
    %1734 = vmatpush1.bf16.msra.mxu0 0
    %1735 = vmatprep.subr.bf16.mxu0 0
    %1736 = vmatpush1.bf16.msra.mxu0 0
    %1737 = vmatprep.subr.bf16.mxu0 0
    %1738 = vmatpush1.bf16.msra.mxu0 0
    %1739 = vmatprep.subr.bf16.mxu0 0
    %1740 = vmatpush1.bf16.msra.mxu0 0
    %1741 = vmatprep.subr.bf16.mxu0 0
    %1742 = vmatpush1.bf16.msra.mxu0 0
    %1743 = vmatprep.subr.bf16.mxu0 0
    %1744 = vmatpush1.bf16.msra.mxu0 0
    %1745 = vmatprep.subr.bf16.mxu0 0
    %1746 = vmatpush1.bf16.msra.mxu0 0
    %1747 = vmatprep.subr.bf16.mxu0 0
    %1748 = vmatpush1.bf16.msra.mxu0 0
    %1749 = vmatprep.subr.bf16.mxu0 0
    %1750 = vmatpush1.bf16.msra.mxu0 0
    %1751 = vmatprep.mubr.bf16.mxu0 0
    %1752 = vmatmul.mubr.bf16.gmra.mrb[0].mxu0 %v1717
    %v1753 = vpop.f32.mrb[0].mxu0
    %v1754 = vadd.f32 0.0, %v1753
    %v1755 = vpop.f32.mrb[0].mxu0
    %v1756 = vpop.f32.mrb[0].mxu0
    %v1757 = vpop.f32.mrb[0].mxu0
    %1758 = vdwg.mxu0
    %v1763 = vunpack.c.l.b16 %v1700
    %v1764 = vunpack.c.l.b16 %v1701
    %v1765 = vunpack.c.l.b16 %v1702
    %v1766 = vunpack.c.l.b16 %v1703
    %v1767 = vpack.c.b16 %v1764, %v1763
    %v1768 = vpack.c.b16 %v1766, %v1765
    %v1772 = vsel %vm74, %v1695, 0
    %1774 = vmatprep.subr.bf16.mxu0 0
    %1775 = vmatpush1.bf16.msra.mxu0 %v1767
    %1776 = vmatprep.subr.bf16.mxu0 0
    %1777 = vmatpush1.bf16.msra.mxu0 %v1768
    %1778 = vmatprep.subr.bf16.mxu0 0
    %1779 = vmatpush1.bf16.msra.mxu0 0
    %1780 = vmatprep.subr.bf16.mxu0 0
    %1781 = vmatpush1.bf16.msra.mxu0 0
    %1782 = vmatprep.subr.bf16.mxu0 0
    %1783 = vmatpush1.bf16.msra.mxu0 0
    %1784 = vmatprep.subr.bf16.mxu0 0
    %1785 = vmatpush1.bf16.msra.mxu0 0
    %1786 = vmatprep.subr.bf16.mxu0 0
    %1787 = vmatpush1.bf16.msra.mxu0 0
    %1788 = vmatprep.subr.bf16.mxu0 0
    %1789 = vmatpush1.bf16.msra.mxu0 0
    %1790 = vmatprep.subr.bf16.mxu0 0
    %1791 = vmatpush1.bf16.msra.mxu0 0
    %1792 = vmatprep.subr.bf16.mxu0 0
    %1793 = vmatpush1.bf16.msra.mxu0 0
    %1794 = vmatprep.subr.bf16.mxu0 0
    %1795 = vmatpush1.bf16.msra.mxu0 0
    %1796 = vmatprep.subr.bf16.mxu0 0
    %1797 = vmatpush1.bf16.msra.mxu0 0
    %1798 = vmatprep.subr.bf16.mxu0 0
    %1799 = vmatpush1.bf16.msra.mxu0 0
    %1800 = vmatprep.subr.bf16.mxu0 0
    %1801 = vmatpush1.bf16.msra.mxu0 0
    %1802 = vmatprep.subr.bf16.mxu0 0
    %1803 = vmatpush1.bf16.msra.mxu0 0
    %1804 = vmatprep.subr.bf16.mxu0 0
    %1805 = vmatpush1.bf16.msra.mxu0 0
    %1806 = vmatprep.mubr.bf16.mxu0 0
    %1807 = vmatmul.mubr.bf16.gmra.mrb[0].mxu0 %v1772
    %v1808 = vpop.f32.mrb[0].mxu0
    %v1809 = vadd.f32 0.0, %v1808
    %v1810 = vpop.f32.mrb[0].mxu0
    %v1811 = vpop.f32.mrb[0].mxu0
    %v1812 = vpop.f32.mrb[0].mxu0
    %1813 = vdwg.mxu0
    %v1814 = vmul.f32 %v1754, 0.015625
    %v1815 = vmul.f32 %v1809, 0.015625
    %v1816 = vlaneseq
    %v1817 = vshrl.u32 %v1816, 7
    %v1818 = vlaneseq
    %v1819 = vand.u32 %v1818, 127
    %v1820 = vld [vmem:[%s6] sm:$0xff]
    %v1821 = vld [vmem:[%s6 + $0x8] sm:$0xff]
    %vm1822 = vcmp.ne.s32.totalorder %v1820, 0
    %vm1823 = vcmp.ne.s32.totalorder %v1821, 0
    %vm1824 = vcmp.le.s32.totalorder %v1819, %v1817
    %v1825 = vsel %vm1822, 1, 0
    %v1826 = vsel %vm1823, 1, 0
    %1827 = vset.pattern.permute.xlu0 0
    %1828 = vperm.xlu0 %1827, %v1825
    %v1829 = vpop.permute.xlu0 %1828
    %1830 = vset.pattern.permute.xlu0 0
    %1831 = vperm.xlu0 %1830, %v1826
    %v1832 = vpop.permute.xlu0 %1831
    %vm1833 = vcmp.eq.s32.totalorder %v1829, 1
    %vm1834 = vcmp.eq.s32.totalorder %v1832, 1
    %v1835 = vsel %vm1824, 1, 0
    %vm1836 = vcmp.eq.s32.totalorder %v1835, 1
    %vm1837 = vmand %vm1833, %vm1836
    %vm1838 = vmand %vm1834, %vm1836
    %v1839 = vsel %vm1837, %v1814, -1e+09
    %v1840 = vsel %vm1838, %v1815, -1e+09
    %vm1841 = vcmask 130048
    %v1842 = vsel %vm1841, %v1839, -inf
    %1843 = vmax.xlane.f32.xlu0 %v1842
    %v1844 = vpop.xlane.xlu0 %1843
    %v1845 = vsel %vm1841, %v1840, -inf
    %1846 = vmax.xlane.f32.xlu0 %v1845
    %v1847 = vpop.xlane.xlu0 %1846
    %v1848 = vsub.f32 %v1839, %v1844
    %v1849 = vsub.f32 %v1840, %v1847
    %v1850 = vmul.f32 %v1848, 1.442695
    %v1851 = vpow.pop %v1850
    %v1852 = vmul.f32 %v1849, 1.442695
    %v1853 = vpow.pop %v1852
    %v1854 = vsel %vm1841, %v1851, 0.0
    %1855 = vadd.xlane.f32.xlu0 %v1854
    %v1856 = vpop.xlane.xlu0 %1855
    %v1857 = vsel %vm1841, %v1853, 0.0
    %1858 = vadd.xlane.f32.xlu0 %v1857
    %v1859 = vpop.xlane.xlu0 %1858
    %v1860 = vrcp.pop %v1856
    %v1861 = vrcp.pop %v1859
    %v1862 = vmul.f32 %v1851, %v1860
    %v1863 = vmul.f32 %v1853, %v1861
    %v1864 = vpack.c.bf16 %v1862, %v1862
    %v1865 = vpack.c.bf16 %v1863, %v1863
    %v1866 = vld [vmem:[#allocation3] sm:$0xf]
    %v1867 = vld [vmem:[#allocation3 + $0x4] sm:$0xf]
    %v1868 = vld [vmem:[#allocation3 + $0x8] sm:$0xf]
    %v1869 = vld [vmem:[#allocation3 + $0xc] sm:$0xf]
    %v1872 = vunpack.c.l.b16 %v1866
    %v1873 = vunpack.c.l.b16 %v1867
    %v1874 = vpack.c.b16 %v1873, %v1872
    %v1877 = vsel %vm1841, %v1864, 0
    %1879 = vmatprep.subr.bf16.mxu0 0
    %1880 = vmatpush1.bf16.msra.mxu0 %v1874
    %1881 = vmatprep.subr.bf16.mxu0 0
    %1882 = vmatpush1.bf16.msra.mxu0 0
    %1883 = vmatprep.subr.bf16.mxu0 0
    %1884 = vmatpush1.bf16.msra.mxu0 0
    %1885 = vmatprep.subr.bf16.mxu0 0
    %1886 = vmatpush1.bf16.msra.mxu0 0
    %1887 = vmatprep.subr.bf16.mxu0 0
    %1888 = vmatpush1.bf16.msra.mxu0 0
    %1889 = vmatprep.subr.bf16.mxu0 0
    %1890 = vmatpush1.bf16.msra.mxu0 0
    %1891 = vmatprep.subr.bf16.mxu0 0
    %1892 = vmatpush1.bf16.msra.mxu0 0
    %1893 = vmatprep.subr.bf16.mxu0 0
    %1894 = vmatpush1.bf16.msra.mxu0 0
    %1895 = vmatprep.subr.bf16.mxu0 0
    %1896 = vmatpush1.bf16.msra.mxu0 0
    %1897 = vmatprep.subr.bf16.mxu0 0
    %1898 = vmatpush1.bf16.msra.mxu0 0
    %1899 = vmatprep.subr.bf16.mxu0 0
    %1900 = vmatpush1.bf16.msra.mxu0 0
    %1901 = vmatprep.subr.bf16.mxu0 0
    %1902 = vmatpush1.bf16.msra.mxu0 0
    %1903 = vmatprep.subr.bf16.mxu0 0
    %1904 = vmatpush1.bf16.msra.mxu0 0
    %1905 = vmatprep.subr.bf16.mxu0 0
    %1906 = vmatpush1.bf16.msra.mxu0 0
    %1907 = vmatprep.subr.bf16.mxu0 0
    %1908 = vmatpush1.bf16.msra.mxu0 0
    %1909 = vmatprep.subr.bf16.mxu0 0
    %1910 = vmatpush1.bf16.msra.mxu0 0
    %1911 = vmatprep.mubr.bf16.mxu0 0
    %1912 = vmatmul.mubr.bf16.gmra.mrb[0].mxu0 %v1877
    %v1913 = vpop.f32.mrb[0].mxu0
    %v1914 = vadd.f32 0.0, %v1913
    %v1915 = vpop.f32.mrb[0].mxu0
    %v1916 = vpop.f32.mrb[0].mxu0
    %v1917 = vpop.f32.mrb[0].mxu0
    %1918 = vdwg.mxu0
    %v1921 = vunpack.c.l.b16 %v1868
    %v1922 = vunpack.c.l.b16 %v1869
    %v1923 = vpack.c.b16 %v1922, %v1921
    %v1926 = vsel %vm1841, %v1865, 0
    %1928 = vmatprep.subr.bf16.mxu0 0
    %1929 = vmatpush1.bf16.msra.mxu0 %v1923
    %1930 = vmatprep.subr.bf16.mxu0 0
    %1931 = vmatpush1.bf16.msra.mxu0 0
    %1932 = vmatprep.subr.bf16.mxu0 0
    %1933 = vmatpush1.bf16.msra.mxu0 0
    %1934 = vmatprep.subr.bf16.mxu0 0
    %1935 = vmatpush1.bf16.msra.mxu0 0
    %1936 = vmatprep.subr.bf16.mxu0 0
    %1937 = vmatpush1.bf16.msra.mxu0 0
    %1938 = vmatprep.subr.bf16.mxu0 0
    %1939 = vmatpush1.bf16.msra.mxu0 0
    %1940 = vmatprep.subr.bf16.mxu0 0
    %1941 = vmatpush1.bf16.msra.mxu0 0
    %1942 = vmatprep.subr.bf16.mxu0 0
    %1943 = vmatpush1.bf16.msra.mxu0 0
    %1944 = vmatprep.subr.bf16.mxu0 0
    %1945 = vmatpush1.bf16.msra.mxu0 0
    %1946 = vmatprep.subr.bf16.mxu0 0
    %1947 = vmatpush1.bf16.msra.mxu0 0
    %1948 = vmatprep.subr.bf16.mxu0 0
    %1949 = vmatpush1.bf16.msra.mxu0 0
    %1950 = vmatprep.subr.bf16.mxu0 0
    %1951 = vmatpush1.bf16.msra.mxu0 0
    %1952 = vmatprep.subr.bf16.mxu0 0
    %1953 = vmatpush1.bf16.msra.mxu0 0
    %1954 = vmatprep.subr.bf16.mxu0 0
    %1955 = vmatpush1.bf16.msra.mxu0 0
    %1956 = vmatprep.subr.bf16.mxu0 0
    %1957 = vmatpush1.bf16.msra.mxu0 0
    %1958 = vmatprep.subr.bf16.mxu0 0
    %1959 = vmatpush1.bf16.msra.mxu0 0
    %1960 = vmatprep.mubr.bf16.mxu0 0
    %1961 = vmatmul.mubr.bf16.gmra.mrb[0].mxu0 %v1926
    %v1962 = vpop.f32.mrb[0].mxu0
    %v1963 = vadd.f32 0.0, %v1962
    %v1964 = vpop.f32.mrb[0].mxu0
    %v1965 = vpop.f32.mrb[0].mxu0
    %v1966 = vpop.f32.mrb[0].mxu0
    %1967 = vdwg.mxu0
    %1968 = vst.msk [vmem:[#allocation6] sm:$0xff] %vm74, %v1914
    %1969 = vst.msk [vmem:[#allocation6 + $0x8] sm:$0xff] %vm74, %v1963
    // Predicated region
    $region34: #{tpu_custom_call.1} parent=1 // pred_check
      _
    $region35: #{tpu_custom_call.1} parent=1 // pred_check_branch
      %1971 = sbr.rel (0) target = $region37
    $region36: #{tpu_custom_call.1} parent=1 // pred_region
      %s1973 = ssub.s32 256, 256
      %1974 = vsyncadd [#allocation5], %s1973
      %s1975 = sshll.u32 [#allocation6], 4
      %s1976 = int_to_ptr.vmem [resolvable:$true] %s1975
      %1981 = dma.vmem_to_hbm [thread:$0]  %s1976, 256, %s7, [#allocation5], 128, 128, 8
    $region37: #{tpu_custom_call.1} parent=1 // pred_fallthru
      _
    // Predicated region
    $region38: #{tpu_custom_call.1} parent=1 // pred_check
      _
    $region39: #{tpu_custom_call.1} parent=1 // pred_check_branch
      %1983 = sbr.rel (0) target = $region41
    $region40: #{tpu_custom_call.1} parent=1 // pred_region
      %1984 = dma.done [#allocation5], 256
    $region41: #{tpu_custom_call.1} parent=1 // pred_fallthru
      _
    %1985 = vsyncpa [#allocation4], 1
    %1986 = vsyncpa [#allocation5], 1

</llo_original>
